<compile_context>
chip_gen: v5e
topology: v5e:2x2
jax: 0.10.0
libtpu: 0.0.40
codegen_flags: <defaults>
</compile_context>

<pallas_src>
import math

import jax
import jax.numpy as jnp
from jax import lax
from jax.experimental import pallas as pl
from jax.experimental.pallas import tpu as pltpu


# ----------------------------------------------------------------------------- helpers
def _layer_norm(z, eps=1e-5):
    # nn.LayerNorm(eps=1e-5, elementwise_affine=False): biased variance over last dim.
    mu = jnp.mean(z, axis=-1, keepdims=True)
    var = jnp.mean((z - mu) ** 2, axis=-1, keepdims=True)
    return (z - mu) * lax.rsqrt(var + eps)


def _softmax_last(s):
    # In-kernel softmax: EUP exp + approx reciprocal (EUP slot, ~free vs. VPU divide).
    p = jnp.exp(s - jnp.max(s, axis=-1, keepdims=True))
    return p * pl.reciprocal(jnp.sum(p, axis=-1, keepdims=True), approx=True)


def _dot_t(a, b):
    # a @ b.T without an explicit transpose: contract the last dim of both operands.
    return lax.dot_general(a, b, (((1,), (1,)), ((), ())),
                           preferred_element_type=jnp.float32)


# ----------------------------------------------------------------------------- kernel
def _build_kernel(L, H, KD, VD, S, D, NB):
    HK = H * KD

    def kernel(x_ref, qdec_ref,
               wkv_e, bkv_e, wo_e, bo_e, w1_e, b1_e, w2_e, b2_e,
               wkv_d, bkv_d, wo_d, bo_d, w1_d, b1_d, w2_d, b2_d,
               o_ref):
        # All NB*S token rows of this batch chunk as one (rows, D) slab.
        h = x_ref[...].reshape(NB * S, D)

        # -------------------- encoder stack (fused; weights resident in VMEM) -------
        for l in range(L):
            # Single fused K|V projection for all heads; score scale folded into K
            # (self-attention uses query == key, matching the PyTorch module).
            kv = jnp.dot(h, wkv_e[l], preferred_element_type=jnp.float32) + bkv_e[l]
            y_parts = []
            for b in range(NB):                       # attention is per sequence
                kv_b = kv[b * S:(b + 1) * S]
                y_b = None
                for hd in range(H):
                    k_h = kv_b[:, hd * KD:(hd + 1) * KD]
                    v_h = kv_b[:, HK + hd * VD:HK + (hd + 1) * VD]
                    att = _softmax_last(_dot_t(k_h, k_h))        # (S, S), q == k
                    ao = jnp.dot(att, v_h, preferred_element_type=jnp.float32)
                    # Fold the head output into the out-projection: no concat needed.
                    c = jnp.dot(ao, wo_e[l, hd * VD:(hd + 1) * VD, :],
                                preferred_element_type=jnp.float32)
                    y_b = c if y_b is None else y_b + c
                y_parts.append(y_b)
            y = (y_parts[0] if NB == 1 else jnp.concatenate(y_parts, axis=0)) + bo_e[l]
            out = _layer_norm(y + h)                             # residual + LayerNorm
            h1 = jnp.maximum(
                jnp.dot(out, w1_e[l], preferred_element_type=jnp.float32) + b1_e[l], 0.0)
            f = jnp.dot(h1, w2_e[l], preferred_element_type=jnp.float32) + b2_e[l]
            h = _layer_norm(f + out)                             # residual + LayerNorm

        # ------------- decoder (cross-attn, residual=False, use_layer_norm=False) ---
        kv = jnp.dot(h, wkv_d[...], preferred_element_type=jnp.float32) + bkv_d[...]
        q = qdec_ref[...]                                        # (C, H*KD), precomputed
        for b in range(NB):
            kv_b = kv[b * S:(b + 1) * S]
            y_b = None
            for hd in range(H):
                k_h = kv_b[:, hd * KD:(hd + 1) * KD]             # 1/sqrt(KD) folded in
                v_h = kv_b[:, HK + hd * VD:HK + (hd + 1) * VD]
                q_h = q[:, hd * KD:(hd + 1) * KD]
                att = _softmax_last(_dot_t(q_h, k_h))            # (C, S)
                ao = jnp.dot(att, v_h, preferred_element_type=jnp.float32)
                c = jnp.dot(ao, wo_d[hd * VD:(hd + 1) * VD, :],
                            preferred_element_type=jnp.float32)
                y_b = c if y_b is None else y_b + c
            y_b = y_b + bo_d[...]
            h1 = jnp.maximum(
                jnp.dot(y_b, w1_d[...], preferred_element_type=jnp.float32) + b1_d[...], 0.0)
            o_ref[b] = (jnp.dot(h1, w2_d[...], preferred_element_type=jnp.float32)
                        + b2_d[...]).astype(o_ref.dtype)

    return kernel


# ----------------------------------------------------------------------------- wrapper
def _pack_kv(wk, bk, wv, bv, k_scale):
    """Fuse per-head K and V projections into (D, H*KD + H*VD); fold k_scale into K."""
    wkv = jnp.concatenate([jnp.concatenate(list(wk * k_scale), axis=-1),
                           jnp.concatenate(list(wv), axis=-1)], axis=-1)
    bkv = jnp.concatenate([jnp.concatenate(list(bk * k_scale), axis=-1),
                           jnp.concatenate(list(bv), axis=-1)], axis=-1)
    return wkv, bkv


def stacked_encoder_forward(x, enc_params, dec_params, cls_embed):
    N, S, D = x.shape
    L = len(enc_params)
    H, _, KD = enc_params[0]["wk"].shape
    VD = enc_params[0]["wv"].shape[2]
    C = cls_embed.shape[0]
    P = dec_params["bo"].shape[1]

    # Encoder: q == k (shared projection), so fold sqrt(1/sqrt(KD)) into K.
    enc_packed = [_pack_kv(p["wk"], p["bk"], p["wv"], p["bv"], float(KD) ** -0.25)
                  for p in enc_params]
    enc_wkv = jnp.stack([w for w, _ in enc_packed])
    enc_bkv = jnp.stack([b for _, b in enc_packed])
    enc_wo = jnp.stack([p["wo"] for p in enc_params])
    enc_bo = jnp.stack([p["bo"] for p in enc_params])
    enc_w1 = jnp.stack([p["w1"] for p in enc_params])
    enc_b1 = jnp.stack([p["b1"] for p in enc_params])
    enc_w2 = jnp.stack([p["w2"] for p in enc_params])
    enc_b2 = jnp.stack([p["b2"] for p in enc_params])

    # Decoder: queries use a separate projection, so fold the full 1/sqrt(KD) into K,
    # and precompute the batch-invariant class queries once in the wrapper.
    dec_wkv, dec_bkv = _pack_kv(dec_params["wk"], dec_params["bk"],
                                dec_params["wv"], dec_params["bv"], 1.0 / math.sqrt(KD))
    q_dec = jnp.concatenate(
        [cls_embed @ dec_params["wqk"][h] + dec_params["bqk"][h] for h in range(H)],
        axis=-1)                                                    # (C, H*KD)

    weights = (q_dec, enc_wkv, enc_bkv, enc_wo, enc_bo, enc_w1, enc_b1, enc_w2, enc_b2,
               dec_wkv, dec_bkv, dec_params["wo"], dec_params["bo"],
               dec_params["w1"], dec_params["b1"], dec_params["w2"], dec_params["b2"])

    # One fused pallas_call for the whole stack.  Grid = batch halves ("parallel") so
    # v7x's two TensorCores each take half the batch; on v5e/v6e it is just 1-2 steps.
    G = 2 if (N >= 2 and N % 2 == 0) else 1
    NB = N // G

    def _const_spec(a):
        nd = a.ndim
        return pl.BlockSpec(a.shape, lambda g, _nd=nd: (0,) * _nd)

    kernel = _build_kernel(L, H, KD, VD, S, D, NB)
    return pl.pallas_call(
        kernel,
        out_shape=jax.ShapeDtypeStruct((N, C, P), jnp.float32),
        grid=(G,),
        in_specs=[pl.BlockSpec((NB, S, D), lambda g: (g, 0, 0))]
                 + [_const_spec(a) for a in weights],
        out_specs=pl.BlockSpec((NB, C, P), lambda g: (g, 0, 0)),
        compiler_params=pltpu.CompilerParams(dimension_semantics=("parallel",)),
    )(x, *weights)


# ----------------------------------------------------------------------------- params
def init_params(key, in_dim, key_dim, value_dim, fc_dim, num_cls, dim_per_cls,
                num_heads, num_attention):
    ks = iter(jax.random.split(key, 256))

    def nrm(shape, scale=0.1):
        return (scale * jax.random.normal(next(ks), shape)).astype(jnp.float32)

    enc_params = []
    for _ in range(num_attention):
        enc_params.append(dict(
            wk=nrm((num_heads, in_dim, key_dim)),  bk=nrm((num_heads, 1, key_dim)),
            wv=nrm((num_heads, in_dim, value_dim)), bv=nrm((num_heads, 1, value_dim)),
            wo=nrm((num_heads * value_dim, in_dim)), bo=nrm((1, in_dim)),
            w1=nrm((in_dim, fc_dim)), b1=nrm((1, fc_dim)),
            w2=nrm((fc_dim, in_dim)), b2=nrm((1, in_dim)),
        ))
    dec_params = dict(
        wk=nrm((num_heads, in_dim, key_dim)),   bk=nrm((num_heads, 1, key_dim)),
        wv=nrm((num_heads, in_dim, value_dim)), bv=nrm((num_heads, 1, value_dim)),
        wqk=nrm((num_heads, in_dim, key_dim)),  bqk=nrm((num_heads, 1, key_dim)),
        wo=nrm((num_heads * value_dim, dim_per_cls)), bo=nrm((1, dim_per_cls)),
        w1=nrm((dim_per_cls, fc_dim)), b1=nrm((1, fc_dim)),
        w2=nrm((fc_dim, dim_per_cls)), b2=nrm((1, dim_per_cls)),
    )
    # nn.Embedding(num_cls, in_dim, max_norm=1): max_norm only renormalizes on indexed
    # lookups; StackedEncoder uses .weight directly, so raw weights are correct here.
    cls_embed = nrm((num_cls, in_dim), scale=1.0)
    return enc_params, dec_params, cls_embed


# ----------------------------------------------------------------------------- pure-JAX reference
def _ref_encoder(x, p):
    hds = []
    for h in range(p["wk"].shape[0]):
        k = jnp.einsum("nsd,dk->nsk", x, p["wk"][h], precision="highest") + p["bk"][h, 0]
        v = jnp.einsum("nsd,dk->nsk", x, p["wv"][h], precision="highest") + p["bv"][h, 0]
        s = jnp.einsum("nsk,ntk->nst", k, k, precision="highest") / math.sqrt(p["wk"].shape[2])
        hds.append(jnp.einsum("nst,ntv->nsv", jax.nn.softmax(s, -1), v, precision="highest"))
    y = jnp.einsum("nsv,vd->nsd", jnp.concatenate(hds, -1), p["wo"], precision="highest") + p["bo"][0]
    out = _layer_norm(y + x)
    h1 = jax.nn.relu(jnp.einsum("nsd,df->nsf", out, p["w1"], precision="highest") + p["b1"][0])
    f = jnp.einsum("nsf,fd->nsd", h1, p["w2"], precision="highest") + p["b2"][0]
    return _layer_norm(f + out)


def _ref_decoder(x, cls_embed, p):
    q_in = jnp.broadcast_to(cls_embed[None], (x.shape[0],) + cls_embed.shape)
    hds = []
    for h in range(p["wk"].shape[0]):
        k = jnp.einsum("nsd,dk->nsk", x, p["wk"][h], precision="highest") + p["bk"][h, 0]
        v = jnp.einsum("nsd,dk->nsk", x, p["wv"][h], precision="highest") + p["bv"][h, 0]
        q = jnp.einsum("ncd,dk->nck", q_in, p["wqk"][h], precision="highest") + p["bqk"][h, 0]
        s = jnp.einsum("nck,nsk->ncs", q, k, precision="highest") / math.sqrt(p["wk"].shape[2])
        hds.append(jnp.einsum("ncs,nsv->ncv", jax.nn.softmax(s, -1), v, precision="highest"))
    y = jnp.einsum("ncv,vd->ncd", jnp.concatenate(hds, -1), p["wo"], precision="highest") + p["bo"][0]
    h1 = jax.nn.relu(jnp.einsum("ncd,df->ncf", y, p["w1"], precision="highest") + p["b1"][0])
    return jnp.einsum("ncf,fd->ncd", h1, p["w2"], precision="highest") + p["b2"][0]


def ref_forward(x, enc_params, dec_params, cls_embed):
    h = x
    for p in enc_params:
        h = _ref_encoder(h, p)
    return _ref_decoder(h, cls_embed, dec_params)


# ----------------------------------------------------------------------------- main
if __name__ == "__main__":
    N, S = 2, 8
    in_dim, key_dim, value_dim, fc_dim = 32, 16, 16, 32
    num_cls, dim_per_cls = 8, 2
    num_heads, num_attention = 2, 2

    root = jax.random.PRNGKey(0)
    kx, kp = jax.random.split(root)
    x = jax.random.normal(kx, (N, S, in_dim), dtype=jnp.float32)
    enc_params, dec_params, cls_embed = init_params(
        kp, in_dim, key_dim, value_dim, fc_dim, num_cls, dim_per_cls,
        num_heads, num_attention)

    out = stacked_encoder_forward(x, enc_params, dec_params, cls_embed)
    out = jax.block_until_ready(out)
    assert out.shape == (N, num_cls, dim_per_cls), out.shape

    ref = ref_forward(x, enc_params, dec_params, cls_embed)
    # 2e-3 tolerance: approx (EUP) reciprocal in the in-kernel softmax denominator.
    assert jnp.allclose(out, ref, atol=2e-3, rtol=2e-3), float(jnp.max(jnp.abs(out - ref)))

    print("KERNEL_OK")
</pallas_src>

<mosaic_0001>
module attributes {stable_mosaic.version = 11 : i64} {
  func.func @kernel(%arg0: i32, %arg1: memref<1x8x32xf32, #tpu.memory_space<vmem>>, %arg2: memref<8x32xf32, #tpu.memory_space<vmem>>, %arg3: memref<2x32x64xf32, #tpu.memory_space<vmem>>, %arg4: memref<2x1x64xf32, #tpu.memory_space<vmem>>, %arg5: memref<2x32x32xf32, #tpu.memory_space<vmem>>, %arg6: memref<2x1x32xf32, #tpu.memory_space<vmem>>, %arg7: memref<2x32x32xf32, #tpu.memory_space<vmem>>, %arg8: memref<2x1x32xf32, #tpu.memory_space<vmem>>, %arg9: memref<2x32x32xf32, #tpu.memory_space<vmem>>, %arg10: memref<2x1x32xf32, #tpu.memory_space<vmem>>, %arg11: memref<32x64xf32, #tpu.memory_space<vmem>>, %arg12: memref<1x64xf32, #tpu.memory_space<vmem>>, %arg13: memref<32x2xf32, #tpu.memory_space<vmem>>, %arg14: memref<1x2xf32, #tpu.memory_space<vmem>>, %arg15: memref<2x32xf32, #tpu.memory_space<vmem>>, %arg16: memref<1x32xf32, #tpu.memory_space<vmem>>, %arg17: memref<32x2xf32, #tpu.memory_space<vmem>>, %arg18: memref<1x2xf32, #tpu.memory_space<vmem>>, %arg19: memref<1x8x2xf32, #tpu.memory_space<vmem>>) attributes {dimension_semantics = [#tpu.dimension_semantics<parallel>], iteration_bounds = array<i64: 2>, scalar_prefetch = 0 : i64, scratch_operands = 0 : i64, tpu.core_type = #tpu.core_type<tc>, window_params = [{transform_indices = @transform_0, window_bounds = array<i64: 1, 8, 32>}, {pipeline_mode = #tpu.pipeline_mode<synchronous>, transform_indices = @transform_1, window_bounds = array<i64: 8, 32>}, {pipeline_mode = #tpu.pipeline_mode<synchronous>, transform_indices = @transform_2, window_bounds = array<i64: 2, 32, 64>}, {pipeline_mode = #tpu.pipeline_mode<synchronous>, transform_indices = @transform_3, window_bounds = array<i64: 2, 1, 64>}, {pipeline_mode = #tpu.pipeline_mode<synchronous>, transform_indices = @transform_4, window_bounds = array<i64: 2, 32, 32>}, {pipeline_mode = #tpu.pipeline_mode<synchronous>, transform_indices = @transform_5, window_bounds = array<i64: 2, 1, 32>}, {pipeline_mode = #tpu.pipeline_mode<synchronous>, transform_indices = @transform_6, window_bounds = array<i64: 2, 32, 32>}, {pipeline_mode = #tpu.pipeline_mode<synchronous>, transform_indices = @transform_7, window_bounds = array<i64: 2, 1, 32>}, {pipeline_mode = #tpu.pipeline_mode<synchronous>, transform_indices = @transform_8, window_bounds = array<i64: 2, 32, 32>}, {pipeline_mode = #tpu.pipeline_mode<synchronous>, transform_indices = @transform_9, window_bounds = array<i64: 2, 1, 32>}, {pipeline_mode = #tpu.pipeline_mode<synchronous>, transform_indices = @transform_10, window_bounds = array<i64: 32, 64>}, {pipeline_mode = #tpu.pipeline_mode<synchronous>, transform_indices = @transform_11, window_bounds = array<i64: 1, 64>}, {pipeline_mode = #tpu.pipeline_mode<synchronous>, transform_indices = @transform_12, window_bounds = array<i64: 32, 2>}, {pipeline_mode = #tpu.pipeline_mode<synchronous>, transform_indices = @transform_13, window_bounds = array<i64: 1, 2>}, {pipeline_mode = #tpu.pipeline_mode<synchronous>, transform_indices = @transform_14, window_bounds = array<i64: 2, 32>}, {pipeline_mode = #tpu.pipeline_mode<synchronous>, transform_indices = @transform_15, window_bounds = array<i64: 1, 32>}, {pipeline_mode = #tpu.pipeline_mode<synchronous>, transform_indices = @transform_16, window_bounds = array<i64: 32, 2>}, {pipeline_mode = #tpu.pipeline_mode<synchronous>, transform_indices = @transform_17, window_bounds = array<i64: 1, 2>}, {transform_indices = @transform_18, window_bounds = array<i64: 1, 8, 2>}]} {
    %c0 = arith.constant 0 : index
    %c0_0 = arith.constant 0 : index
    %c0_1 = arith.constant 0 : index
    %0 = vector.load %arg1[%c0, %c0_0, %c0_1] : memref<1x8x32xf32, #tpu.memory_space<vmem>>, vector<1x8x32xf32>
    %1 = vector.shape_cast %0 : vector<1x8x32xf32> to vector<8x32xf32>
    %c0_2 = arith.constant 0 : index
    %c0_3 = arith.constant 0 : index
    %c0_4 = arith.constant 0 : index
    %2 = vector.load %arg3[%c0_2, %c0_3, %c0_4] : memref<2x32x64xf32, #tpu.memory_space<vmem>>, vector<1x32x64xf32>
    %3 = vector.shape_cast %2 : vector<1x32x64xf32> to vector<32x64xf32>
    %cst = arith.constant dense<0.000000e+00> : vector<8x64xf32>
    %4 = tpu.matmul %1, %3, %cst {dimension_numbers = #tpu.dot_dimension_numbers<[1], [0], [0], [1], [0, 0, 1, 1], [], []>} : vector<8x32xf32>, vector<32x64xf32>, vector<8x64xf32> -> vector<8x64xf32>
    %c0_5 = arith.constant 0 : index
    %c0_6 = arith.constant 0 : index
    %c0_7 = arith.constant 0 : index
    %5 = vector.load %arg4[%c0_5, %c0_6, %c0_7] : memref<2x1x64xf32, #tpu.memory_space<vmem>>, vector<1x1x64xf32>
    %6 = vector.shape_cast %5 : vector<1x1x64xf32> to vector<1x64xf32>
    %7 = vector.broadcast %6 : vector<1x64xf32> to vector<8x64xf32>
    %8 = arith.addf %4, %7 : vector<8x64xf32>
    %9 = vector.extract_strided_slice %8 {offsets = [0, 0], sizes = [8, 16], strides = [1, 1]} : vector<8x64xf32> to vector<8x16xf32>
    %10 = vector.extract_strided_slice %8 {offsets = [0, 32], sizes = [8, 16], strides = [1, 1]} : vector<8x64xf32> to vector<8x16xf32>
    %cst_8 = arith.constant dense<0.000000e+00> : vector<8x8xf32>
    %11 = tpu.matmul %9, %9, %cst_8 {dimension_numbers = #tpu.dot_dimension_numbers<[1], [1], [0], [0], [0, 0, 1, 0], [], []>} : vector<8x16xf32>, vector<8x16xf32>, vector<8x8xf32> -> vector<8x8xf32>
    %cst_9 = arith.constant dense<0xFF800000> : vector<8xf32>
    %12 = vector.multi_reduction <maximumf>, %11, %cst_9 [1] : vector<8x8xf32> to vector<8xf32>
    %13 = vector.shape_cast %12 : vector<8xf32> to vector<8x1xf32>
    %14 = vector.broadcast %13 : vector<8x1xf32> to vector<8x8xf32>
    %15 = arith.subf %11, %14 : vector<8x8xf32>
    %16 = math.exp %15 : vector<8x8xf32>
    %cst_10 = arith.constant dense<0.000000e+00> : vector<8xf32>
    %17 = vector.multi_reduction <add>, %16, %cst_10 [1] : vector<8x8xf32> to vector<8xf32>
    %18 = vector.shape_cast %17 : vector<8xf32> to vector<8x1xf32>
    %19 = tpu.reciprocal %18 {approx = true} : vector<8x1xf32> -> vector<8x1xf32>
    %20 = vector.broadcast %19 : vector<8x1xf32> to vector<8x8xf32>
    %21 = arith.mulf %16, %20 : vector<8x8xf32>
    %cst_11 = arith.constant dense<0.000000e+00> : vector<8x16xf32>
    %22 = tpu.matmul %21, %10, %cst_11 {dimension_numbers = #tpu.dot_dimension_numbers<[1], [0], [0], [1], [0, 0, 1, 1], [], []>} : vector<8x8xf32>, vector<8x16xf32>, vector<8x16xf32> -> vector<8x16xf32>
    %c0_12 = arith.constant 0 : index
    %c0_13 = arith.constant 0 : index
    %c0_14 = arith.constant 0 : index
    %23 = vector.load %arg5[%c0_12, %c0_13, %c0_14] : memref<2x32x32xf32, #tpu.memory_space<vmem>>, vector<1x16x32xf32>
    %24 = vector.shape_cast %23 : vector<1x16x32xf32> to vector<16x32xf32>
    %cst_15 = arith.constant dense<0.000000e+00> : vector<8x32xf32>
    %25 = tpu.matmul %22, %24, %cst_15 {dimension_numbers = #tpu.dot_dimension_numbers<[1], [0], [0], [1], [0, 0, 1, 1], [], []>} : vector<8x16xf32>, vector<16x32xf32>, vector<8x32xf32> -> vector<8x32xf32>
    %26 = vector.extract_strided_slice %8 {offsets = [0, 16], sizes = [8, 16], strides = [1, 1]} : vector<8x64xf32> to vector<8x16xf32>
    %27 = vector.extract_strided_slice %8 {offsets = [0, 48], sizes = [8, 16], strides = [1, 1]} : vector<8x64xf32> to vector<8x16xf32>
    %cst_16 = arith.constant dense<0.000000e+00> : vector<8x8xf32>
    %28 = tpu.matmul %26, %26, %cst_16 {dimension_numbers = #tpu.dot_dimension_numbers<[1], [1], [0], [0], [0, 0, 1, 0], [], []>} : vector<8x16xf32>, vector<8x16xf32>, vector<8x8xf32> -> vector<8x8xf32>
    %cst_17 = arith.constant dense<0xFF800000> : vector<8xf32>
    %29 = vector.multi_reduction <maximumf>, %28, %cst_17 [1] : vector<8x8xf32> to vector<8xf32>
    %30 = vector.shape_cast %29 : vector<8xf32> to vector<8x1xf32>
    %31 = vector.broadcast %30 : vector<8x1xf32> to vector<8x8xf32>
    %32 = arith.subf %28, %31 : vector<8x8xf32>
    %33 = math.exp %32 : vector<8x8xf32>
    %cst_18 = arith.constant dense<0.000000e+00> : vector<8xf32>
    %34 = vector.multi_reduction <add>, %33, %cst_18 [1] : vector<8x8xf32> to vector<8xf32>
    %35 = vector.shape_cast %34 : vector<8xf32> to vector<8x1xf32>
    %36 = tpu.reciprocal %35 {approx = true} : vector<8x1xf32> -> vector<8x1xf32>
    %37 = vector.broadcast %36 : vector<8x1xf32> to vector<8x8xf32>
    %38 = arith.mulf %33, %37 : vector<8x8xf32>
    %cst_19 = arith.constant dense<0.000000e+00> : vector<8x16xf32>
    %39 = tpu.matmul %38, %27, %cst_19 {dimension_numbers = #tpu.dot_dimension_numbers<[1], [0], [0], [1], [0, 0, 1, 1], [], []>} : vector<8x8xf32>, vector<8x16xf32>, vector<8x16xf32> -> vector<8x16xf32>
    %c0_20 = arith.constant 0 : index
    %c16 = arith.constant 16 : index
    %c0_21 = arith.constant 0 : index
    %40 = vector.load %arg5[%c0_20, %c16, %c0_21] : memref<2x32x32xf32, #tpu.memory_space<vmem>>, vector<1x16x32xf32>
    %41 = vector.shape_cast %40 : vector<1x16x32xf32> to vector<16x32xf32>
    %cst_22 = arith.constant dense<0.000000e+00> : vector<8x32xf32>
    %42 = tpu.matmul %39, %41, %cst_22 {dimension_numbers = #tpu.dot_dimension_numbers<[1], [0], [0], [1], [0, 0, 1, 1], [], []>} : vector<8x16xf32>, vector<16x32xf32>, vector<8x32xf32> -> vector<8x32xf32>
    %43 = arith.addf %25, %42 : vector<8x32xf32>
    %c0_23 = arith.constant 0 : index
    %c0_24 = arith.constant 0 : index
    %c0_25 = arith.constant 0 : index
    %44 = vector.load %arg6[%c0_23, %c0_24, %c0_25] : memref<2x1x32xf32, #tpu.memory_space<vmem>>, vector<1x1x32xf32>
    %45 = vector.shape_cast %44 : vector<1x1x32xf32> to vector<1x32xf32>
    %46 = vector.broadcast %45 : vector<1x32xf32> to vector<8x32xf32>
    %47 = arith.addf %43, %46 : vector<8x32xf32>
    %48 = arith.addf %47, %1 : vector<8x32xf32>
    %cst_26 = arith.constant dense<0.000000e+00> : vector<8xf32>
    %49 = vector.multi_reduction <add>, %48, %cst_26 [1] : vector<8x32xf32> to vector<8xf32>
    %50 = vector.shape_cast %49 : vector<8xf32> to vector<8x1xf32>
    %cst_27 = arith.constant 3.200000e+01 : f32
    %51 = vector.broadcast %cst_27 : f32 to vector<8x1xf32>
    %52 = arith.divf %50, %51 : vector<8x1xf32>
    %53 = vector.broadcast %52 : vector<8x1xf32> to vector<8x32xf32>
    %54 = arith.subf %48, %53 : vector<8x32xf32>
    %55 = arith.mulf %54, %54 : vector<8x32xf32>
    %cst_28 = arith.constant dense<0.000000e+00> : vector<8xf32>
    %56 = vector.multi_reduction <add>, %55, %cst_28 [1] : vector<8x32xf32> to vector<8xf32>
    %57 = vector.shape_cast %56 : vector<8xf32> to vector<8x1xf32>
    %cst_29 = arith.constant 3.200000e+01 : f32
    %58 = vector.broadcast %cst_29 : f32 to vector<8x1xf32>
    %59 = arith.divf %57, %58 : vector<8x1xf32>
    %60 = vector.broadcast %52 : vector<8x1xf32> to vector<8x32xf32>
    %61 = arith.subf %48, %60 : vector<8x32xf32>
    %cst_30 = arith.constant 9.99999974E-6 : f32
    %62 = vector.broadcast %cst_30 : f32 to vector<8x1xf32>
    %63 = arith.addf %59, %62 : vector<8x1xf32>
    %64 = math.rsqrt %63 : vector<8x1xf32>
    %65 = vector.broadcast %64 : vector<8x1xf32> to vector<8x32xf32>
    %66 = arith.mulf %61, %65 : vector<8x32xf32>
    %c0_31 = arith.constant 0 : index
    %c0_32 = arith.constant 0 : index
    %c0_33 = arith.constant 0 : index
    %67 = vector.load %arg7[%c0_31, %c0_32, %c0_33] : memref<2x32x32xf32, #tpu.memory_space<vmem>>, vector<1x32x32xf32>
    %68 = vector.shape_cast %67 : vector<1x32x32xf32> to vector<32x32xf32>
    %cst_34 = arith.constant dense<0.000000e+00> : vector<8x32xf32>
    %69 = tpu.matmul %66, %68, %cst_34 {dimension_numbers = #tpu.dot_dimension_numbers<[1], [0], [0], [1], [0, 0, 1, 1], [], []>} : vector<8x32xf32>, vector<32x32xf32>, vector<8x32xf32> -> vector<8x32xf32>
    %c0_35 = arith.constant 0 : index
    %c0_36 = arith.constant 0 : index
    %c0_37 = arith.constant 0 : index
    %70 = vector.load %arg8[%c0_35, %c0_36, %c0_37] : memref<2x1x32xf32, #tpu.memory_space<vmem>>, vector<1x1x32xf32>
    %71 = vector.shape_cast %70 : vector<1x1x32xf32> to vector<1x32xf32>
    %72 = vector.broadcast %71 : vector<1x32xf32> to vector<8x32xf32>
    %73 = arith.addf %69, %72 : vector<8x32xf32>
    %cst_38 = arith.constant 0.000000e+00 : f32
    %74 = vector.broadcast %cst_38 : f32 to vector<8x32xf32>
    %75 = arith.maximumf %73, %74 : vector<8x32xf32>
    %c0_39 = arith.constant 0 : index
    %c0_40 = arith.constant 0 : index
    %c0_41 = arith.constant 0 : index
    %76 = vector.load %arg9[%c0_39, %c0_40, %c0_41] : memref<2x32x32xf32, #tpu.memory_space<vmem>>, vector<1x32x32xf32>
    %77 = vector.shape_cast %76 : vector<1x32x32xf32> to vector<32x32xf32>
    %cst_42 = arith.constant dense<0.000000e+00> : vector<8x32xf32>
    %78 = tpu.matmul %75, %77, %cst_42 {dimension_numbers = #tpu.dot_dimension_numbers<[1], [0], [0], [1], [0, 0, 1, 1], [], []>} : vector<8x32xf32>, vector<32x32xf32>, vector<8x32xf32> -> vector<8x32xf32>
    %c0_43 = arith.constant 0 : index
    %c0_44 = arith.constant 0 : index
    %c0_45 = arith.constant 0 : index
    %79 = vector.load %arg10[%c0_43, %c0_44, %c0_45] : memref<2x1x32xf32, #tpu.memory_space<vmem>>, vector<1x1x32xf32>
    %80 = vector.shape_cast %79 : vector<1x1x32xf32> to vector<1x32xf32>
    %81 = vector.broadcast %80 : vector<1x32xf32> to vector<8x32xf32>
    %82 = arith.addf %78, %81 : vector<8x32xf32>
    %83 = arith.addf %82, %66 : vector<8x32xf32>
    %cst_46 = arith.constant dense<0.000000e+00> : vector<8xf32>
    %84 = vector.multi_reduction <add>, %83, %cst_46 [1] : vector<8x32xf32> to vector<8xf32>
    %85 = vector.shape_cast %84 : vector<8xf32> to vector<8x1xf32>
    %cst_47 = arith.constant 3.200000e+01 : f32
    %86 = vector.broadcast %cst_47 : f32 to vector<8x1xf32>
    %87 = arith.divf %85, %86 : vector<8x1xf32>
    %88 = vector.broadcast %87 : vector<8x1xf32> to vector<8x32xf32>
    %89 = arith.subf %83, %88 : vector<8x32xf32>
    %90 = arith.mulf %89, %89 : vector<8x32xf32>
    %cst_48 = arith.constant dense<0.000000e+00> : vector<8xf32>
    %91 = vector.multi_reduction <add>, %90, %cst_48 [1] : vector<8x32xf32> to vector<8xf32>
    %92 = vector.shape_cast %91 : vector<8xf32> to vector<8x1xf32>
    %cst_49 = arith.constant 3.200000e+01 : f32
    %93 = vector.broadcast %cst_49 : f32 to vector<8x1xf32>
    %94 = arith.divf %92, %93 : vector<8x1xf32>
    %95 = vector.broadcast %87 : vector<8x1xf32> to vector<8x32xf32>
    %96 = arith.subf %83, %95 : vector<8x32xf32>
    %cst_50 = arith.constant 9.99999974E-6 : f32
    %97 = vector.broadcast %cst_50 : f32 to vector<8x1xf32>
    %98 = arith.addf %94, %97 : vector<8x1xf32>
    %99 = math.rsqrt %98 : vector<8x1xf32>
    %100 = vector.broadcast %99 : vector<8x1xf32> to vector<8x32xf32>
    %101 = arith.mulf %96, %100 : vector<8x32xf32>
    %c1 = arith.constant 1 : index
    %c0_51 = arith.constant 0 : index
    %c0_52 = arith.constant 0 : index
    %102 = vector.load %arg3[%c1, %c0_51, %c0_52] : memref<2x32x64xf32, #tpu.memory_space<vmem>>, vector<1x32x64xf32>
    %103 = vector.shape_cast %102 : vector<1x32x64xf32> to vector<32x64xf32>
    %cst_53 = arith.constant dense<0.000000e+00> : vector<8x64xf32>
    %104 = tpu.matmul %101, %103, %cst_53 {dimension_numbers = #tpu.dot_dimension_numbers<[1], [0], [0], [1], [0, 0, 1, 1], [], []>} : vector<8x32xf32>, vector<32x64xf32>, vector<8x64xf32> -> vector<8x64xf32>
    %c1_54 = arith.constant 1 : index
    %c0_55 = arith.constant 0 : index
    %c0_56 = arith.constant 0 : index
    %105 = vector.load %arg4[%c1_54, %c0_55, %c0_56] : memref<2x1x64xf32, #tpu.memory_space<vmem>>, vector<1x1x64xf32>
    %106 = vector.shape_cast %105 : vector<1x1x64xf32> to vector<1x64xf32>
    %107 = vector.broadcast %106 : vector<1x64xf32> to vector<8x64xf32>
    %108 = arith.addf %104, %107 : vector<8x64xf32>
    %109 = vector.extract_strided_slice %108 {offsets = [0, 0], sizes = [8, 16], strides = [1, 1]} : vector<8x64xf32> to vector<8x16xf32>
    %110 = vector.extract_strided_slice %108 {offsets = [0, 32], sizes = [8, 16], strides = [1, 1]} : vector<8x64xf32> to vector<8x16xf32>
    %cst_57 = arith.constant dense<0.000000e+00> : vector<8x8xf32>
    %111 = tpu.matmul %109, %109, %cst_57 {dimension_numbers = #tpu.dot_dimension_numbers<[1], [1], [0], [0], [0, 0, 1, 0], [], []>} : vector<8x16xf32>, vector<8x16xf32>, vector<8x8xf32> -> vector<8x8xf32>
    %cst_58 = arith.constant dense<0xFF800000> : vector<8xf32>
    %112 = vector.multi_reduction <maximumf>, %111, %cst_58 [1] : vector<8x8xf32> to vector<8xf32>
    %113 = vector.shape_cast %112 : vector<8xf32> to vector<8x1xf32>
    %114 = vector.broadcast %113 : vector<8x1xf32> to vector<8x8xf32>
    %115 = arith.subf %111, %114 : vector<8x8xf32>
    %116 = math.exp %115 : vector<8x8xf32>
    %cst_59 = arith.constant dense<0.000000e+00> : vector<8xf32>
    %117 = vector.multi_reduction <add>, %116, %cst_59 [1] : vector<8x8xf32> to vector<8xf32>
    %118 = vector.shape_cast %117 : vector<8xf32> to vector<8x1xf32>
    %119 = tpu.reciprocal %118 {approx = true} : vector<8x1xf32> -> vector<8x1xf32>
    %120 = vector.broadcast %119 : vector<8x1xf32> to vector<8x8xf32>
    %121 = arith.mulf %116, %120 : vector<8x8xf32>
    %cst_60 = arith.constant dense<0.000000e+00> : vector<8x16xf32>
    %122 = tpu.matmul %121, %110, %cst_60 {dimension_numbers = #tpu.dot_dimension_numbers<[1], [0], [0], [1], [0, 0, 1, 1], [], []>} : vector<8x8xf32>, vector<8x16xf32>, vector<8x16xf32> -> vector<8x16xf32>
    %c1_61 = arith.constant 1 : index
    %c0_62 = arith.constant 0 : index
    %c0_63 = arith.constant 0 : index
    %123 = vector.load %arg5[%c1_61, %c0_62, %c0_63] : memref<2x32x32xf32, #tpu.memory_space<vmem>>, vector<1x16x32xf32>
    %124 = vector.shape_cast %123 : vector<1x16x32xf32> to vector<16x32xf32>
    %cst_64 = arith.constant dense<0.000000e+00> : vector<8x32xf32>
    %125 = tpu.matmul %122, %124, %cst_64 {dimension_numbers = #tpu.dot_dimension_numbers<[1], [0], [0], [1], [0, 0, 1, 1], [], []>} : vector<8x16xf32>, vector<16x32xf32>, vector<8x32xf32> -> vector<8x32xf32>
    %126 = vector.extract_strided_slice %108 {offsets = [0, 16], sizes = [8, 16], strides = [1, 1]} : vector<8x64xf32> to vector<8x16xf32>
    %127 = vector.extract_strided_slice %108 {offsets = [0, 48], sizes = [8, 16], strides = [1, 1]} : vector<8x64xf32> to vector<8x16xf32>
    %cst_65 = arith.constant dense<0.000000e+00> : vector<8x8xf32>
    %128 = tpu.matmul %126, %126, %cst_65 {dimension_numbers = #tpu.dot_dimension_numbers<[1], [1], [0], [0], [0, 0, 1, 0], [], []>} : vector<8x16xf32>, vector<8x16xf32>, vector<8x8xf32> -> vector<8x8xf32>
    %cst_66 = arith.constant dense<0xFF800000> : vector<8xf32>
    %129 = vector.multi_reduction <maximumf>, %128, %cst_66 [1] : vector<8x8xf32> to vector<8xf32>
    %130 = vector.shape_cast %129 : vector<8xf32> to vector<8x1xf32>
    %131 = vector.broadcast %130 : vector<8x1xf32> to vector<8x8xf32>
    %132 = arith.subf %128, %131 : vector<8x8xf32>
    %133 = math.exp %132 : vector<8x8xf32>
    %cst_67 = arith.constant dense<0.000000e+00> : vector<8xf32>
    %134 = vector.multi_reduction <add>, %133, %cst_67 [1] : vector<8x8xf32> to vector<8xf32>
    %135 = vector.shape_cast %134 : vector<8xf32> to vector<8x1xf32>
    %136 = tpu.reciprocal %135 {approx = true} : vector<8x1xf32> -> vector<8x1xf32>
    %137 = vector.broadcast %136 : vector<8x1xf32> to vector<8x8xf32>
    %138 = arith.mulf %133, %137 : vector<8x8xf32>
    %cst_68 = arith.constant dense<0.000000e+00> : vector<8x16xf32>
    %139 = tpu.matmul %138, %127, %cst_68 {dimension_numbers = #tpu.dot_dimension_numbers<[1], [0], [0], [1], [0, 0, 1, 1], [], []>} : vector<8x8xf32>, vector<8x16xf32>, vector<8x16xf32> -> vector<8x16xf32>
    %c1_69 = arith.constant 1 : index
    %c16_70 = arith.constant 16 : index
    %c0_71 = arith.constant 0 : index
    %140 = vector.load %arg5[%c1_69, %c16_70, %c0_71] : memref<2x32x32xf32, #tpu.memory_space<vmem>>, vector<1x16x32xf32>
    %141 = vector.shape_cast %140 : vector<1x16x32xf32> to vector<16x32xf32>
    %cst_72 = arith.constant dense<0.000000e+00> : vector<8x32xf32>
    %142 = tpu.matmul %139, %141, %cst_72 {dimension_numbers = #tpu.dot_dimension_numbers<[1], [0], [0], [1], [0, 0, 1, 1], [], []>} : vector<8x16xf32>, vector<16x32xf32>, vector<8x32xf32> -> vector<8x32xf32>
    %143 = arith.addf %125, %142 : vector<8x32xf32>
    %c1_73 = arith.constant 1 : index
    %c0_74 = arith.constant 0 : index
    %c0_75 = arith.constant 0 : index
    %144 = vector.load %arg6[%c1_73, %c0_74, %c0_75] : memref<2x1x32xf32, #tpu.memory_space<vmem>>, vector<1x1x32xf32>
    %145 = vector.shape_cast %144 : vector<1x1x32xf32> to vector<1x32xf32>
    %146 = vector.broadcast %145 : vector<1x32xf32> to vector<8x32xf32>
    %147 = arith.addf %143, %146 : vector<8x32xf32>
    %148 = arith.addf %147, %101 : vector<8x32xf32>
    %cst_76 = arith.constant dense<0.000000e+00> : vector<8xf32>
    %149 = vector.multi_reduction <add>, %148, %cst_76 [1] : vector<8x32xf32> to vector<8xf32>
    %150 = vector.shape_cast %149 : vector<8xf32> to vector<8x1xf32>
    %cst_77 = arith.constant 3.200000e+01 : f32
    %151 = vector.broadcast %cst_77 : f32 to vector<8x1xf32>
    %152 = arith.divf %150, %151 : vector<8x1xf32>
    %153 = vector.broadcast %152 : vector<8x1xf32> to vector<8x32xf32>
    %154 = arith.subf %148, %153 : vector<8x32xf32>
    %155 = arith.mulf %154, %154 : vector<8x32xf32>
    %cst_78 = arith.constant dense<0.000000e+00> : vector<8xf32>
    %156 = vector.multi_reduction <add>, %155, %cst_78 [1] : vector<8x32xf32> to vector<8xf32>
    %157 = vector.shape_cast %156 : vector<8xf32> to vector<8x1xf32>
    %cst_79 = arith.constant 3.200000e+01 : f32
    %158 = vector.broadcast %cst_79 : f32 to vector<8x1xf32>
    %159 = arith.divf %157, %158 : vector<8x1xf32>
    %160 = vector.broadcast %152 : vector<8x1xf32> to vector<8x32xf32>
    %161 = arith.subf %148, %160 : vector<8x32xf32>
    %cst_80 = arith.constant 9.99999974E-6 : f32
    %162 = vector.broadcast %cst_80 : f32 to vector<8x1xf32>
    %163 = arith.addf %159, %162 : vector<8x1xf32>
    %164 = math.rsqrt %163 : vector<8x1xf32>
    %165 = vector.broadcast %164 : vector<8x1xf32> to vector<8x32xf32>
    %166 = arith.mulf %161, %165 : vector<8x32xf32>
    %c1_81 = arith.constant 1 : index
    %c0_82 = arith.constant 0 : index
    %c0_83 = arith.constant 0 : index
    %167 = vector.load %arg7[%c1_81, %c0_82, %c0_83] : memref<2x32x32xf32, #tpu.memory_space<vmem>>, vector<1x32x32xf32>
    %168 = vector.shape_cast %167 : vector<1x32x32xf32> to vector<32x32xf32>
    %cst_84 = arith.constant dense<0.000000e+00> : vector<8x32xf32>
    %169 = tpu.matmul %166, %168, %cst_84 {dimension_numbers = #tpu.dot_dimension_numbers<[1], [0], [0], [1], [0, 0, 1, 1], [], []>} : vector<8x32xf32>, vector<32x32xf32>, vector<8x32xf32> -> vector<8x32xf32>
    %c1_85 = arith.constant 1 : index
    %c0_86 = arith.constant 0 : index
    %c0_87 = arith.constant 0 : index
    %170 = vector.load %arg8[%c1_85, %c0_86, %c0_87] : memref<2x1x32xf32, #tpu.memory_space<vmem>>, vector<1x1x32xf32>
    %171 = vector.shape_cast %170 : vector<1x1x32xf32> to vector<1x32xf32>
    %172 = vector.broadcast %171 : vector<1x32xf32> to vector<8x32xf32>
    %173 = arith.addf %169, %172 : vector<8x32xf32>
    %cst_88 = arith.constant 0.000000e+00 : f32
    %174 = vector.broadcast %cst_88 : f32 to vector<8x32xf32>
    %175 = arith.maximumf %173, %174 : vector<8x32xf32>
    %c1_89 = arith.constant 1 : index
    %c0_90 = arith.constant 0 : index
    %c0_91 = arith.constant 0 : index
    %176 = vector.load %arg9[%c1_89, %c0_90, %c0_91] : memref<2x32x32xf32, #tpu.memory_space<vmem>>, vector<1x32x32xf32>
    %177 = vector.shape_cast %176 : vector<1x32x32xf32> to vector<32x32xf32>
    %cst_92 = arith.constant dense<0.000000e+00> : vector<8x32xf32>
    %178 = tpu.matmul %175, %177, %cst_92 {dimension_numbers = #tpu.dot_dimension_numbers<[1], [0], [0], [1], [0, 0, 1, 1], [], []>} : vector<8x32xf32>, vector<32x32xf32>, vector<8x32xf32> -> vector<8x32xf32>
    %c1_93 = arith.constant 1 : index
    %c0_94 = arith.constant 0 : index
    %c0_95 = arith.constant 0 : index
    %179 = vector.load %arg10[%c1_93, %c0_94, %c0_95] : memref<2x1x32xf32, #tpu.memory_space<vmem>>, vector<1x1x32xf32>
    %180 = vector.shape_cast %179 : vector<1x1x32xf32> to vector<1x32xf32>
    %181 = vector.broadcast %180 : vector<1x32xf32> to vector<8x32xf32>
    %182 = arith.addf %178, %181 : vector<8x32xf32>
    %183 = arith.addf %182, %166 : vector<8x32xf32>
    %cst_96 = arith.constant dense<0.000000e+00> : vector<8xf32>
    %184 = vector.multi_reduction <add>, %183, %cst_96 [1] : vector<8x32xf32> to vector<8xf32>
    %185 = vector.shape_cast %184 : vector<8xf32> to vector<8x1xf32>
    %cst_97 = arith.constant 3.200000e+01 : f32
    %186 = vector.broadcast %cst_97 : f32 to vector<8x1xf32>
    %187 = arith.divf %185, %186 : vector<8x1xf32>
    %188 = vector.broadcast %187 : vector<8x1xf32> to vector<8x32xf32>
    %189 = arith.subf %183, %188 : vector<8x32xf32>
    %190 = arith.mulf %189, %189 : vector<8x32xf32>
    %cst_98 = arith.constant dense<0.000000e+00> : vector<8xf32>
    %191 = vector.multi_reduction <add>, %190, %cst_98 [1] : vector<8x32xf32> to vector<8xf32>
    %192 = vector.shape_cast %191 : vector<8xf32> to vector<8x1xf32>
    %cst_99 = arith.constant 3.200000e+01 : f32
    %193 = vector.broadcast %cst_99 : f32 to vector<8x1xf32>
    %194 = arith.divf %192, %193 : vector<8x1xf32>
    %195 = vector.broadcast %187 : vector<8x1xf32> to vector<8x32xf32>
    %196 = arith.subf %183, %195 : vector<8x32xf32>
    %cst_100 = arith.constant 9.99999974E-6 : f32
    %197 = vector.broadcast %cst_100 : f32 to vector<8x1xf32>
    %198 = arith.addf %194, %197 : vector<8x1xf32>
    %199 = math.rsqrt %198 : vector<8x1xf32>
    %200 = vector.broadcast %199 : vector<8x1xf32> to vector<8x32xf32>
    %201 = arith.mulf %196, %200 : vector<8x32xf32>
    %c0_101 = arith.constant 0 : index
    %c0_102 = arith.constant 0 : index
    %202 = vector.load %arg11[%c0_101, %c0_102] : memref<32x64xf32, #tpu.memory_space<vmem>>, vector<32x64xf32>
    %cst_103 = arith.constant dense<0.000000e+00> : vector<8x64xf32>
    %203 = tpu.matmul %201, %202, %cst_103 {dimension_numbers = #tpu.dot_dimension_numbers<[1], [0], [0], [1], [0, 0, 1, 1], [], []>} : vector<8x32xf32>, vector<32x64xf32>, vector<8x64xf32> -> vector<8x64xf32>
    %c0_104 = arith.constant 0 : index
    %c0_105 = arith.constant 0 : index
    %204 = vector.load %arg12[%c0_104, %c0_105] : memref<1x64xf32, #tpu.memory_space<vmem>>, vector<1x64xf32>
    %205 = vector.broadcast %204 : vector<1x64xf32> to vector<8x64xf32>
    %206 = arith.addf %203, %205 : vector<8x64xf32>
    %c0_106 = arith.constant 0 : index
    %c0_107 = arith.constant 0 : index
    %207 = vector.load %arg2[%c0_106, %c0_107] : memref<8x32xf32, #tpu.memory_space<vmem>>, vector<8x32xf32>
    %208 = vector.extract_strided_slice %206 {offsets = [0, 0], sizes = [8, 16], strides = [1, 1]} : vector<8x64xf32> to vector<8x16xf32>
    %209 = vector.extract_strided_slice %206 {offsets = [0, 32], sizes = [8, 16], strides = [1, 1]} : vector<8x64xf32> to vector<8x16xf32>
    %210 = vector.extract_strided_slice %207 {offsets = [0, 0], sizes = [8, 16], strides = [1, 1]} : vector<8x32xf32> to vector<8x16xf32>
    %cst_108 = arith.constant dense<0.000000e+00> : vector<8x8xf32>
    %211 = tpu.matmul %210, %208, %cst_108 {dimension_numbers = #tpu.dot_dimension_numbers<[1], [1], [0], [0], [0, 0, 1, 0], [], []>} : vector<8x16xf32>, vector<8x16xf32>, vector<8x8xf32> -> vector<8x8xf32>
    %cst_109 = arith.constant dense<0xFF800000> : vector<8xf32>
    %212 = vector.multi_reduction <maximumf>, %211, %cst_109 [1] : vector<8x8xf32> to vector<8xf32>
    %213 = vector.shape_cast %212 : vector<8xf32> to vector<8x1xf32>
    %214 = vector.broadcast %213 : vector<8x1xf32> to vector<8x8xf32>
    %215 = arith.subf %211, %214 : vector<8x8xf32>
    %216 = math.exp %215 : vector<8x8xf32>
    %cst_110 = arith.constant dense<0.000000e+00> : vector<8xf32>
    %217 = vector.multi_reduction <add>, %216, %cst_110 [1] : vector<8x8xf32> to vector<8xf32>
    %218 = vector.shape_cast %217 : vector<8xf32> to vector<8x1xf32>
    %219 = tpu.reciprocal %218 {approx = true} : vector<8x1xf32> -> vector<8x1xf32>
    %220 = vector.broadcast %219 : vector<8x1xf32> to vector<8x8xf32>
    %221 = arith.mulf %216, %220 : vector<8x8xf32>
    %cst_111 = arith.constant dense<0.000000e+00> : vector<8x16xf32>
    %222 = tpu.matmul %221, %209, %cst_111 {dimension_numbers = #tpu.dot_dimension_numbers<[1], [0], [0], [1], [0, 0, 1, 1], [], []>} : vector<8x8xf32>, vector<8x16xf32>, vector<8x16xf32> -> vector<8x16xf32>
    %c0_112 = arith.constant 0 : index
    %c0_113 = arith.constant 0 : index
    %223 = vector.load %arg13[%c0_112, %c0_113] : memref<32x2xf32, #tpu.memory_space<vmem>>, vector<16x2xf32>
    %cst_114 = arith.constant dense<0.000000e+00> : vector<8x2xf32>
    %224 = tpu.matmul %222, %223, %cst_114 {dimension_numbers = #tpu.dot_dimension_numbers<[1], [0], [0], [1], [0, 0, 1, 1], [], []>} : vector<8x16xf32>, vector<16x2xf32>, vector<8x2xf32> -> vector<8x2xf32>
    %225 = vector.extract_strided_slice %206 {offsets = [0, 16], sizes = [8, 16], strides = [1, 1]} : vector<8x64xf32> to vector<8x16xf32>
    %226 = vector.extract_strided_slice %206 {offsets = [0, 48], sizes = [8, 16], strides = [1, 1]} : vector<8x64xf32> to vector<8x16xf32>
    %227 = vector.extract_strided_slice %207 {offsets = [0, 16], sizes = [8, 16], strides = [1, 1]} : vector<8x32xf32> to vector<8x16xf32>
    %cst_115 = arith.constant dense<0.000000e+00> : vector<8x8xf32>
    %228 = tpu.matmul %227, %225, %cst_115 {dimension_numbers = #tpu.dot_dimension_numbers<[1], [1], [0], [0], [0, 0, 1, 0], [], []>} : vector<8x16xf32>, vector<8x16xf32>, vector<8x8xf32> -> vector<8x8xf32>
    %cst_116 = arith.constant dense<0xFF800000> : vector<8xf32>
    %229 = vector.multi_reduction <maximumf>, %228, %cst_116 [1] : vector<8x8xf32> to vector<8xf32>
    %230 = vector.shape_cast %229 : vector<8xf32> to vector<8x1xf32>
    %231 = vector.broadcast %230 : vector<8x1xf32> to vector<8x8xf32>
    %232 = arith.subf %228, %231 : vector<8x8xf32>
    %233 = math.exp %232 : vector<8x8xf32>
    %cst_117 = arith.constant dense<0.000000e+00> : vector<8xf32>
    %234 = vector.multi_reduction <add>, %233, %cst_117 [1] : vector<8x8xf32> to vector<8xf32>
    %235 = vector.shape_cast %234 : vector<8xf32> to vector<8x1xf32>
    %236 = tpu.reciprocal %235 {approx = true} : vector<8x1xf32> -> vector<8x1xf32>
    %237 = vector.broadcast %236 : vector<8x1xf32> to vector<8x8xf32>
    %238 = arith.mulf %233, %237 : vector<8x8xf32>
    %cst_118 = arith.constant dense<0.000000e+00> : vector<8x16xf32>
    %239 = tpu.matmul %238, %226, %cst_118 {dimension_numbers = #tpu.dot_dimension_numbers<[1], [0], [0], [1], [0, 0, 1, 1], [], []>} : vector<8x8xf32>, vector<8x16xf32>, vector<8x16xf32> -> vector<8x16xf32>
    %c16_119 = arith.constant 16 : index
    %c0_120 = arith.constant 0 : index
    %240 = vector.load %arg13[%c16_119, %c0_120] : memref<32x2xf32, #tpu.memory_space<vmem>>, vector<16x2xf32>
    %cst_121 = arith.constant dense<0.000000e+00> : vector<8x2xf32>
    %241 = tpu.matmul %239, %240, %cst_121 {dimension_numbers = #tpu.dot_dimension_numbers<[1], [0], [0], [1], [0, 0, 1, 1], [], []>} : vector<8x16xf32>, vector<16x2xf32>, vector<8x2xf32> -> vector<8x2xf32>
    %242 = arith.addf %224, %241 : vector<8x2xf32>
    %c0_122 = arith.constant 0 : index
    %c0_123 = arith.constant 0 : index
    %243 = vector.load %arg14[%c0_122, %c0_123] : memref<1x2xf32, #tpu.memory_space<vmem>>, vector<1x2xf32>
    %244 = vector.broadcast %243 : vector<1x2xf32> to vector<8x2xf32>
    %245 = arith.addf %242, %244 : vector<8x2xf32>
    %c0_124 = arith.constant 0 : index
    %c0_125 = arith.constant 0 : index
    %246 = vector.load %arg15[%c0_124, %c0_125] : memref<2x32xf32, #tpu.memory_space<vmem>>, vector<2x32xf32>
    %cst_126 = arith.constant dense<0.000000e+00> : vector<8x32xf32>
    %247 = tpu.matmul %245, %246, %cst_126 {dimension_numbers = #tpu.dot_dimension_numbers<[1], [0], [0], [1], [0, 0, 1, 1], [], []>} : vector<8x2xf32>, vector<2x32xf32>, vector<8x32xf32> -> vector<8x32xf32>
    %c0_127 = arith.constant 0 : index
    %c0_128 = arith.constant 0 : index
    %248 = vector.load %arg16[%c0_127, %c0_128] : memref<1x32xf32, #tpu.memory_space<vmem>>, vector<1x32xf32>
    %249 = vector.broadcast %248 : vector<1x32xf32> to vector<8x32xf32>
    %250 = arith.addf %247, %249 : vector<8x32xf32>
    %cst_129 = arith.constant 0.000000e+00 : f32
    %251 = vector.broadcast %cst_129 : f32 to vector<8x32xf32>
    %252 = arith.maximumf %250, %251 : vector<8x32xf32>
    %c0_130 = arith.constant 0 : index
    %c0_131 = arith.constant 0 : index
    %253 = vector.load %arg17[%c0_130, %c0_131] : memref<32x2xf32, #tpu.memory_space<vmem>>, vector<32x2xf32>
    %cst_132 = arith.constant dense<0.000000e+00> : vector<8x2xf32>
    %254 = tpu.matmul %252, %253, %cst_132 {dimension_numbers = #tpu.dot_dimension_numbers<[1], [0], [0], [1], [0, 0, 1, 1], [], []>} : vector<8x32xf32>, vector<32x2xf32>, vector<8x2xf32> -> vector<8x2xf32>
    %c0_133 = arith.constant 0 : index
    %c0_134 = arith.constant 0 : index
    %255 = vector.load %arg18[%c0_133, %c0_134] : memref<1x2xf32, #tpu.memory_space<vmem>>, vector<1x2xf32>
    %256 = vector.broadcast %255 : vector<1x2xf32> to vector<8x2xf32>
    %257 = arith.addf %254, %256 : vector<8x2xf32>
    %c0_135 = arith.constant 0 : index
    %c0_136 = arith.constant 0 : index
    %c0_137 = arith.constant 0 : index
    %258 = vector.load %arg19[%c0_135, %c0_136, %c0_137] : memref<1x8x2xf32, #tpu.memory_space<vmem>>, vector<1x8x2xf32>
    %259 = vector.shape_cast %258 : vector<1x8x2xf32> to vector<8x2xf32>
    %260 = vector.shape_cast %257 : vector<8x2xf32> to vector<1x8x2xf32>
    tpu.vector_store %arg19[%c0_135, %c0_136, %c0_137], %260 {strides = array<i32>} : memref<1x8x2xf32, #tpu.memory_space<vmem>>, vector<1x8x2xf32>,
    return
  }
  func.func @transform_0(%arg0: i32) -> (i32, i32, i32) {
    %c0_i32 = arith.constant 0 : i32
    %c0_i32_0 = arith.constant 0 : i32
    %c0_i32_1 = arith.constant 0 : i32
    return %arg0, %c0_i32, %c0_i32_0 : i32, i32, i32
  }
  func.func @transform_1(%arg0: i32) -> (i32, i32) {
    %c0_i32 = arith.constant 0 : i32
    %c0_i32_0 = arith.constant 0 : i32
    %c0_i32_1 = arith.constant 0 : i32
    return %c0_i32, %c0_i32_0 : i32, i32
  }
  func.func @transform_2(%arg0: i32) -> (i32, i32, i32) {
    %c0_i32 = arith.constant 0 : i32
    %c0_i32_0 = arith.constant 0 : i32
    %c0_i32_1 = arith.constant 0 : i32
    %c0_i32_2 = arith.constant 0 : i32
    return %c0_i32, %c0_i32_0, %c0_i32_1 : i32, i32, i32
  }
  func.func @transform_3(%arg0: i32) -> (i32, i32, i32) {
    %c0_i32 = arith.constant 0 : i32
    %c0_i32_0 = arith.constant 0 : i32
    %c0_i32_1 = arith.constant 0 : i32
    %c0_i32_2 = arith.constant 0 : i32
    return %c0_i32, %c0_i32_0, %c0_i32_1 : i32, i32, i32
  }
  func.func @transform_4(%arg0: i32) -> (i32, i32, i32) {
    %c0_i32 = arith.constant 0 : i32
    %c0_i32_0 = arith.constant 0 : i32
    %c0_i32_1 = arith.constant 0 : i32
    %c0_i32_2 = arith.constant 0 : i32
    return %c0_i32, %c0_i32_0, %c0_i32_1 : i32, i32, i32
  }
  func.func @transform_5(%arg0: i32) -> (i32, i32, i32) {
    %c0_i32 = arith.constant 0 : i32
    %c0_i32_0 = arith.constant 0 : i32
    %c0_i32_1 = arith.constant 0 : i32
    %c0_i32_2 = arith.constant 0 : i32
    return %c0_i32, %c0_i32_0, %c0_i32_1 : i32, i32, i32
  }
  func.func @transform_6(%arg0: i32) -> (i32, i32, i32) {
    %c0_i32 = arith.constant 0 : i32
    %c0_i32_0 = arith.constant 0 : i32
    %c0_i32_1 = arith.constant 0 : i32
    %c0_i32_2 = arith.constant 0 : i32
    return %c0_i32, %c0_i32_0, %c0_i32_1 : i32, i32, i32
  }
  func.func @transform_7(%arg0: i32) -> (i32, i32, i32) {
    %c0_i32 = arith.constant 0 : i32
    %c0_i32_0 = arith.constant 0 : i32
    %c0_i32_1 = arith.constant 0 : i32
    %c0_i32_2 = arith.constant 0 : i32
    return %c0_i32, %c0_i32_0, %c0_i32_1 : i32, i32, i32
  }
  func.func @transform_8(%arg0: i32) -> (i32, i32, i32) {
    %c0_i32 = arith.constant 0 : i32
    %c0_i32_0 = arith.constant 0 : i32
    %c0_i32_1 = arith.constant 0 : i32
    %c0_i32_2 = arith.constant 0 : i32
    return %c0_i32, %c0_i32_0, %c0_i32_1 : i32, i32, i32
  }
  func.func @transform_9(%arg0: i32) -> (i32, i32, i32) {
    %c0_i32 = arith.constant 0 : i32
    %c0_i32_0 = arith.constant 0 : i32
    %c0_i32_1 = arith.constant 0 : i32
    %c0_i32_2 = arith.constant 0 : i32
    return %c0_i32, %c0_i32_0, %c0_i32_1 : i32, i32, i32
  }
  func.func @transform_10(%arg0: i32) -> (i32, i32) {
    %c0_i32 = arith.constant 0 : i32
    %c0_i32_0 = arith.constant 0 : i32
    %c0_i32_1 = arith.constant 0 : i32
    return %c0_i32, %c0_i32_0 : i32, i32
  }
  func.func @transform_11(%arg0: i32) -> (i32, i32) {
    %c0_i32 = arith.constant 0 : i32
    %c0_i32_0 = arith.constant 0 : i32
    %c0_i32_1 = arith.constant 0 : i32
    return %c0_i32, %c0_i32_0 : i32, i32
  }
  func.func @transform_12(%arg0: i32) -> (i32, i32) {
    %c0_i32 = arith.constant 0 : i32
    %c0_i32_0 = arith.constant 0 : i32
    %c0_i32_1 = arith.constant 0 : i32
    return %c0_i32, %c0_i32_0 : i32, i32
  }
  func.func @transform_13(%arg0: i32) -> (i32, i32) {
    %c0_i32 = arith.constant 0 : i32
    %c0_i32_0 = arith.constant 0 : i32
    %c0_i32_1 = arith.constant 0 : i32
    return %c0_i32, %c0_i32_0 : i32, i32
  }
  func.func @transform_14(%arg0: i32) -> (i32, i32) {
    %c0_i32 = arith.constant 0 : i32
    %c0_i32_0 = arith.constant 0 : i32
    %c0_i32_1 = arith.constant 0 : i32
    return %c0_i32, %c0_i32_0 : i32, i32
  }
  func.func @transform_15(%arg0: i32) -> (i32, i32) {
    %c0_i32 = arith.constant 0 : i32
    %c0_i32_0 = arith.constant 0 : i32
    %c0_i32_1 = arith.constant 0 : i32
    return %c0_i32, %c0_i32_0 : i32, i32
  }
  func.func @transform_16(%arg0: i32) -> (i32, i32) {
    %c0_i32 = arith.constant 0 : i32
    %c0_i32_0 = arith.constant 0 : i32
    %c0_i32_1 = arith.constant 0 : i32
    return %c0_i32, %c0_i32_0 : i32, i32
  }
  func.func @transform_17(%arg0: i32) -> (i32, i32) {
    %c0_i32 = arith.constant 0 : i32
    %c0_i32_0 = arith.constant 0 : i32
    %c0_i32_1 = arith.constant 0 : i32
    return %c0_i32, %c0_i32_0 : i32, i32
  }
  func.func @transform_18(%arg0: i32) -> (i32, i32, i32) {
    %c0_i32 = arith.constant 0 : i32
    %c0_i32_0 = arith.constant 0 : i32
    %c0_i32_1 = arith.constant 0 : i32
    return %arg0, %c0_i32, %c0_i32_0 : i32, i32, i32
  }
}

</mosaic_0001>

<llo_original>
// kernel: tpu_custom_call.1
$region0: #{tpu_custom_call.1}
  #allocation0 [shape = 'u32[]', space=smem, size = 0x4, offset = 0x4, fixed_abs, tag = 'smem constant byte address 0x4 - core index']
  #allocation1 [shape = 'u32[72,128]{1,0:T(1,128)}', space=vmem, size = 0x9000, scoped, tag = 'internal scratch']
  %s0 = inlined_call_operand.hbm [shape: f32[2,8,32], index: 0, kind: input, shape index: {}]
  %s1 = inlined_call_operand.hbm [shape: f32[8,32], index: 1, kind: input, shape index: {}]
  %s2 = inlined_call_operand.vmem [shape: f32[2,32,64], index: 2, kind: input, shape index: {}]
  %s3 = inlined_call_operand.vmem [shape: f32[2,1,64], index: 3, kind: input, shape index: {}]
  %s4 = inlined_call_operand.hbm [shape: f32[2,32,32], index: 4, kind: input, shape index: {}]
  %s5 = inlined_call_operand.vmem [shape: f32[2,1,32], index: 5, kind: input, shape index: {}]
  %s6 = inlined_call_operand.hbm [shape: f32[2,32,32], index: 6, kind: input, shape index: {}]
  %s7 = inlined_call_operand.vmem [shape: f32[2,1,32], index: 7, kind: input, shape index: {}]
  %s8 = inlined_call_operand.hbm [shape: f32[2,32,32], index: 8, kind: input, shape index: {}]
  %s9 = inlined_call_operand.vmem [shape: f32[2,1,32], index: 9, kind: input, shape index: {}]
  %s10 = inlined_call_operand.hbm [shape: f32[32,64], index: 10, kind: input, shape index: {}]
  %s11 = inlined_call_operand.hbm [shape: f32[1,64], index: 11, kind: input, shape index: {}]
  %s12 = inlined_call_operand.vmem [shape: f32[32,2], index: 12, kind: input, shape index: {}]
  %s13 = inlined_call_operand.vmem [shape: f32[1,2], index: 13, kind: input, shape index: {}]
  %s14 = inlined_call_operand.vmem [shape: f32[2,32], index: 14, kind: input, shape index: {}]
  %s15 = inlined_call_operand.vmem [shape: f32[1,32], index: 15, kind: input, shape index: {}]
  %s16 = inlined_call_operand.vmem [shape: f32[32,2], index: 16, kind: input, shape index: {}]
  %s17 = inlined_call_operand.vmem [shape: f32[1,2], index: 17, kind: input, shape index: {}]
  %s18 = inlined_call_operand.vmem [shape: f32[2,8,2], index: 18, kind: output, shape index: {}]
  %s19 = sld [smem:[#allocation0]]
  $region133: #{tpu_custom_call.1} parent=0
    _
  %s21 = ssub.s32 1, %s19
  %s22 = scalar_select 0, %s21, %s19
  $region1: #{tpu_custom_call.1} parent=0
    #allocation2 [shape = 'u8[8192]{0}', space=vmem, size = 0x2000, scoped, tag = 'input window, operand 0']
    #allocation3 [shape = 's32[2]{0}', space=sflag, size = 0x8, scoped, tag = 'scoped memory for tpu_custom_call.1']
    #allocation4 [shape = 'u8[4096]{0}', space=vmem, size = 0x1000, scoped, tag = 'input window, operand 1, single buffered']
    #allocation5 [shape = 's32[1]{0}', space=sflag, size = 0x4, scoped, tag = 'scoped memory for tpu_custom_call.1']
    #allocation6 [shape = 'u8[32768]{0}', space=vmem, size = 0x8000, scoped, tag = 'input window, operand 4, single buffered']
    #allocation7 [shape = 'u8[32768]{0}', space=vmem, size = 0x8000, scoped, tag = 'input window, operand 6, single buffered']
    #allocation8 [shape = 's32[1]{0}', space=sflag, size = 0x4, scoped, tag = 'scoped memory for tpu_custom_call.1']
    #allocation9 [shape = 'u8[32768]{0}', space=vmem, size = 0x8000, scoped, tag = 'input window, operand 8, single buffered']
    #allocation10 [shape = 'u8[16384]{0}', space=vmem, size = 0x4000, scoped, tag = 'input window, operand 10, single buffered']
    #allocation11 [shape = 's32[1]{0}', space=sflag, size = 0x4, scoped, tag = 'scoped memory for tpu_custom_call.1']
    #allocation12 [shape = 'u8[512]{0}', space=vmem, size = 0x400, scoped, tag = 'input window, operand 11, single buffered']
    %23 = vsyncpa [#allocation3], 0
    %s24 = scalar_lea.sflag [#allocation3], 1
    %25 = vsyncpa %s24, 0
    %26 = vsyncpa [#allocation5], 0
    %27 = vsyncpa [#allocation8], 0
    %28 = vsyncpa [#allocation11], 0
    loop: start=0, step=1, limit=4
    $region2: #{tpu_custom_call.1} parent=1 // loop_pre_header
      _
    $region3: #{tpu_custom_call.1} parent=1 // loop_header
      %s30 = sphi 0, %s34
      %p31 = scmp.ge.s32.totalorder %s30, 4
      %s40 = sphi 0, %s42
      %s43 = sphi 0, %s40
      %s44 = sphi 0, %s43
      %s60 = sphi 0, %s44
      %s64 = sphi 0, %s64
      %s66 = sphi 0, %s64
      %s67 = sphi 0, %s66
      %s81 = sphi 0, %s67
      %s85 = sphi 0, %s85
      %s87 = sphi 0, %s85
      %s88 = sphi 0, %s87
      %s102 = sphi 0, %s88
      %s106 = sphi 0, %s106
      %s108 = sphi 0, %s106
      %s109 = sphi 0, %s108
      %s123 = sphi 0, %s109
      %s127 = sphi 0, %s127
      %s129 = sphi 0, %s127
      %s130 = sphi 0, %s129
      %s144 = sphi 0, %s130
      %s148 = sphi 0, %s148
      %s150 = sphi 0, %s148
      %s151 = sphi 0, %s150
      %s165 = sphi 0, %s151
      %s169 = sphi 0, %s169
      %s171 = sphi 0, %s169
      %s172 = sphi 0, %s171
      %s186 = sphi 0, %s172
      %s190 = sphi 0, %s190
      %s192 = sphi 0, %s190
      %s193 = sphi 0, %s192
      %s207 = sphi 0, %s193
      %s211 = sphi 0, %s211
      %s213 = sphi 0, %s211
      %s214 = sphi 0, %s213
      %s228 = sphi 0, %s214
      %s232 = sphi 0, %s232
      %s234 = sphi 0, %s232
      %s235 = sphi 0, %s234
      %s249 = sphi 0, %s235
      %s253 = sphi 0, %s253
      %s255 = sphi 0, %s253
      %s256 = sphi 0, %s255
      %s270 = sphi 0, %s256
      %s274 = sphi 0, %s274
      %s276 = sphi 0, %s274
      %s277 = sphi 0, %s276
      %s291 = sphi 0, %s277
      %s295 = sphi 0, %s295
      %s297 = sphi 0, %s295
      %s298 = sphi 0, %s297
      %s312 = sphi 0, %s298
      %s316 = sphi 0, %s316
      %s318 = sphi 0, %s316
      %s319 = sphi 0, %s318
      %s333 = sphi 0, %s319
      %s337 = sphi 0, %s337
      %s339 = sphi 0, %s337
      %s340 = sphi 0, %s339
      %s354 = sphi 0, %s340
      %s358 = sphi 0, %s358
      %s360 = sphi 0, %s358
      %s361 = sphi 0, %s360
      %s375 = sphi 0, %s361
      %s379 = sphi 0, %s379
      %s381 = sphi 0, %s379
      %s382 = sphi 0, %s381
      %s396 = sphi 0, %s382
      %s400 = sphi 0, %s400
      %s402 = sphi 0, %s400
      %s403 = sphi 0, %s402
      %s417 = sphi 0, %s403
      %s423 = sphi 0, %s425
      %s426 = sphi 0, %s423
      %s427 = sphi 0, %s426
      %s443 = sphi 0, %s427
    $region4: #{tpu_custom_call.1} parent=1 // loop_header_branch
      %33 = sbr.rel (%p31) target = $region8
    $region5: #{tpu_custom_call.1} parent=1 // loop_body
      %s35 = ssub.s32 %s30, 1
      %s36 = ssub.s32 %s30, 2
      %s37 = sadd.s32 %s30, 1
      %s38 = ssub.s32 %s30, %s37
      %p39 = scmp.eq.s32.totalorder %s38, 0
      %s41 = sadd.s32 %s40, 1
      %s42 = scalar_select %p39, %s40, %s41
      %p45 = pneg %p39
      %p46 = scmp.eq.s32.totalorder %s30, 1
      %p47 = por %p45, %p46
      %p48 = scmp.ne.s32.totalorder %s40, %s43
      %p49 = scmp.eq.s32.totalorder %s30, 0
      %p50 = por %p48, %p49
      %p51 = scmp.ne.s32.totalorder %s40, %s43
      %p52 = scmp.eq.s32.totalorder %s35, 1
      %p53 = por %p51, %p52
      %p54 = scmp.ne.s32.totalorder %s43, %s44
      %p55 = scmp.eq.s32.totalorder %s35, 0
      %p56 = por %p54, %p55
      %p57 = scmp.ne.s32.totalorder %s43, %s44
      %p58 = scmp.eq.s32.totalorder %s36, 1
      %p59 = por %p57, %p58
      %p61 = scmp.ne.s32.totalorder %s44, %s60
      %p62 = scmp.eq.s32.totalorder %s36, 0
      %p63 = por %p61, %p62
      %s65 = sadd.s32 %s64, 1
      %p68 = scmp.eq.s32.totalorder %s30, 1
      %p69 = scmp.ne.s32.totalorder %s64, %s66
      %p70 = scmp.eq.s32.totalorder %s30, 0
      %p71 = por %p69, %p70
      %p72 = scmp.ne.s32.totalorder %s64, %s66
      %p73 = scmp.eq.s32.totalorder %s35, 1
      %p74 = por %p72, %p73
      %p75 = scmp.ne.s32.totalorder %s66, %s67
      %p76 = scmp.eq.s32.totalorder %s35, 0
      %p77 = por %p75, %p76
      %p78 = scmp.ne.s32.totalorder %s66, %s67
      %p79 = scmp.eq.s32.totalorder %s36, 1
      %p80 = por %p78, %p79
      %p82 = scmp.ne.s32.totalorder %s67, %s81
      %p83 = scmp.eq.s32.totalorder %s36, 0
      %p84 = por %p82, %p83
      %s86 = sadd.s32 %s85, 1
      %p89 = scmp.eq.s32.totalorder %s30, 1
      %p90 = scmp.ne.s32.totalorder %s85, %s87
      %p91 = scmp.eq.s32.totalorder %s30, 0
      %p92 = por %p90, %p91
      %p93 = scmp.ne.s32.totalorder %s85, %s87
      %p94 = scmp.eq.s32.totalorder %s35, 1
      %p95 = por %p93, %p94
      %p96 = scmp.ne.s32.totalorder %s87, %s88
      %p97 = scmp.eq.s32.totalorder %s35, 0
      %p98 = por %p96, %p97
      %p99 = scmp.ne.s32.totalorder %s87, %s88
      %p100 = scmp.eq.s32.totalorder %s36, 1
      %p101 = por %p99, %p100
      %p103 = scmp.ne.s32.totalorder %s88, %s102
      %p104 = scmp.eq.s32.totalorder %s36, 0
      %p105 = por %p103, %p104
      %s107 = sadd.s32 %s106, 1
      %p110 = scmp.eq.s32.totalorder %s30, 1
      %p111 = scmp.ne.s32.totalorder %s106, %s108
      %p112 = scmp.eq.s32.totalorder %s30, 0
      %p113 = por %p111, %p112
      %p114 = scmp.ne.s32.totalorder %s106, %s108
      %p115 = scmp.eq.s32.totalorder %s35, 1
      %p116 = por %p114, %p115
      %p117 = scmp.ne.s32.totalorder %s108, %s109
      %p118 = scmp.eq.s32.totalorder %s35, 0
      %p119 = por %p117, %p118
      %p120 = scmp.ne.s32.totalorder %s108, %s109
      %p121 = scmp.eq.s32.totalorder %s36, 1
      %p122 = por %p120, %p121
      %p124 = scmp.ne.s32.totalorder %s109, %s123
      %p125 = scmp.eq.s32.totalorder %s36, 0
      %p126 = por %p124, %p125
      %s128 = sadd.s32 %s127, 1
      %p131 = scmp.eq.s32.totalorder %s30, 1
      %p132 = scmp.ne.s32.totalorder %s127, %s129
      %p133 = scmp.eq.s32.totalorder %s30, 0
      %p134 = por %p132, %p133
      %p135 = scmp.ne.s32.totalorder %s127, %s129
      %p136 = scmp.eq.s32.totalorder %s35, 1
      %p137 = por %p135, %p136
      %p138 = scmp.ne.s32.totalorder %s129, %s130
      %p139 = scmp.eq.s32.totalorder %s35, 0
      %p140 = por %p138, %p139
      %p141 = scmp.ne.s32.totalorder %s129, %s130
      %p142 = scmp.eq.s32.totalorder %s36, 1
      %p143 = por %p141, %p142
      %p145 = scmp.ne.s32.totalorder %s130, %s144
      %p146 = scmp.eq.s32.totalorder %s36, 0
      %p147 = por %p145, %p146
      %s149 = sadd.s32 %s148, 1
      %p152 = scmp.eq.s32.totalorder %s30, 1
      %p153 = scmp.ne.s32.totalorder %s148, %s150
      %p154 = scmp.eq.s32.totalorder %s30, 0
      %p155 = por %p153, %p154
      %p156 = scmp.ne.s32.totalorder %s148, %s150
      %p157 = scmp.eq.s32.totalorder %s35, 1
      %p158 = por %p156, %p157
      %p159 = scmp.ne.s32.totalorder %s150, %s151
      %p160 = scmp.eq.s32.totalorder %s35, 0
      %p161 = por %p159, %p160
      %p162 = scmp.ne.s32.totalorder %s150, %s151
      %p163 = scmp.eq.s32.totalorder %s36, 1
      %p164 = por %p162, %p163
      %p166 = scmp.ne.s32.totalorder %s151, %s165
      %p167 = scmp.eq.s32.totalorder %s36, 0
      %p168 = por %p166, %p167
      %s170 = sadd.s32 %s169, 1
      %p173 = scmp.eq.s32.totalorder %s30, 1
      %p174 = scmp.ne.s32.totalorder %s169, %s171
      %p175 = scmp.eq.s32.totalorder %s30, 0
      %p176 = por %p174, %p175
      %p177 = scmp.ne.s32.totalorder %s169, %s171
      %p178 = scmp.eq.s32.totalorder %s35, 1
      %p179 = por %p177, %p178
      %p180 = scmp.ne.s32.totalorder %s171, %s172
      %p181 = scmp.eq.s32.totalorder %s35, 0
      %p182 = por %p180, %p181
      %p183 = scmp.ne.s32.totalorder %s171, %s172
      %p184 = scmp.eq.s32.totalorder %s36, 1
      %p185 = por %p183, %p184
      %p187 = scmp.ne.s32.totalorder %s172, %s186
      %p188 = scmp.eq.s32.totalorder %s36, 0
      %p189 = por %p187, %p188
      %s191 = sadd.s32 %s190, 1
      %p194 = scmp.eq.s32.totalorder %s30, 1
      %p195 = scmp.ne.s32.totalorder %s190, %s192
      %p196 = scmp.eq.s32.totalorder %s30, 0
      %p197 = por %p195, %p196
      %p198 = scmp.ne.s32.totalorder %s190, %s192
      %p199 = scmp.eq.s32.totalorder %s35, 1
      %p200 = por %p198, %p199
      %p201 = scmp.ne.s32.totalorder %s192, %s193
      %p202 = scmp.eq.s32.totalorder %s35, 0
      %p203 = por %p201, %p202
      %p204 = scmp.ne.s32.totalorder %s192, %s193
      %p205 = scmp.eq.s32.totalorder %s36, 1
      %p206 = por %p204, %p205
      %p208 = scmp.ne.s32.totalorder %s193, %s207
      %p209 = scmp.eq.s32.totalorder %s36, 0
      %p210 = por %p208, %p209
      %s212 = sadd.s32 %s211, 1
      %p215 = scmp.eq.s32.totalorder %s30, 1
      %p216 = scmp.ne.s32.totalorder %s211, %s213
      %p217 = scmp.eq.s32.totalorder %s30, 0
      %p218 = por %p216, %p217
      %p219 = scmp.ne.s32.totalorder %s211, %s213
      %p220 = scmp.eq.s32.totalorder %s35, 1
      %p221 = por %p219, %p220
      %p222 = scmp.ne.s32.totalorder %s213, %s214
      %p223 = scmp.eq.s32.totalorder %s35, 0
      %p224 = por %p222, %p223
      %p225 = scmp.ne.s32.totalorder %s213, %s214
      %p226 = scmp.eq.s32.totalorder %s36, 1
      %p227 = por %p225, %p226
      %p229 = scmp.ne.s32.totalorder %s214, %s228
      %p230 = scmp.eq.s32.totalorder %s36, 0
      %p231 = por %p229, %p230
      %s233 = sadd.s32 %s232, 1
      %p236 = scmp.eq.s32.totalorder %s30, 1
      %p237 = scmp.ne.s32.totalorder %s232, %s234
      %p238 = scmp.eq.s32.totalorder %s30, 0
      %p239 = por %p237, %p238
      %p240 = scmp.ne.s32.totalorder %s232, %s234
      %p241 = scmp.eq.s32.totalorder %s35, 1
      %p242 = por %p240, %p241
      %p243 = scmp.ne.s32.totalorder %s234, %s235
      %p244 = scmp.eq.s32.totalorder %s35, 0
      %p245 = por %p243, %p244
      %p246 = scmp.ne.s32.totalorder %s234, %s235
      %p247 = scmp.eq.s32.totalorder %s36, 1
      %p248 = por %p246, %p247
      %p250 = scmp.ne.s32.totalorder %s235, %s249
      %p251 = scmp.eq.s32.totalorder %s36, 0
      %p252 = por %p250, %p251
      %s254 = sadd.s32 %s253, 1
      %p257 = scmp.eq.s32.totalorder %s30, 1
      %p258 = scmp.ne.s32.totalorder %s253, %s255
      %p259 = scmp.eq.s32.totalorder %s30, 0
      %p260 = por %p258, %p259
      %p261 = scmp.ne.s32.totalorder %s253, %s255
      %p262 = scmp.eq.s32.totalorder %s35, 1
      %p263 = por %p261, %p262
      %p264 = scmp.ne.s32.totalorder %s255, %s256
      %p265 = scmp.eq.s32.totalorder %s35, 0
      %p266 = por %p264, %p265
      %p267 = scmp.ne.s32.totalorder %s255, %s256
      %p268 = scmp.eq.s32.totalorder %s36, 1
      %p269 = por %p267, %p268
      %p271 = scmp.ne.s32.totalorder %s256, %s270
      %p272 = scmp.eq.s32.totalorder %s36, 0
      %p273 = por %p271, %p272
      %s275 = sadd.s32 %s274, 1
      %p278 = scmp.eq.s32.totalorder %s30, 1
      %p279 = scmp.ne.s32.totalorder %s274, %s276
      %p280 = scmp.eq.s32.totalorder %s30, 0
      %p281 = por %p279, %p280
      %p282 = scmp.ne.s32.totalorder %s274, %s276
      %p283 = scmp.eq.s32.totalorder %s35, 1
      %p284 = por %p282, %p283
      %p285 = scmp.ne.s32.totalorder %s276, %s277
      %p286 = scmp.eq.s32.totalorder %s35, 0
      %p287 = por %p285, %p286
      %p288 = scmp.ne.s32.totalorder %s276, %s277
      %p289 = scmp.eq.s32.totalorder %s36, 1
      %p290 = por %p288, %p289
      %p292 = scmp.ne.s32.totalorder %s277, %s291
      %p293 = scmp.eq.s32.totalorder %s36, 0
      %p294 = por %p292, %p293
      %s296 = sadd.s32 %s295, 1
      %p299 = scmp.eq.s32.totalorder %s30, 1
      %p300 = scmp.ne.s32.totalorder %s295, %s297
      %p301 = scmp.eq.s32.totalorder %s30, 0
      %p302 = por %p300, %p301
      %p303 = scmp.ne.s32.totalorder %s295, %s297
      %p304 = scmp.eq.s32.totalorder %s35, 1
      %p305 = por %p303, %p304
      %p306 = scmp.ne.s32.totalorder %s297, %s298
      %p307 = scmp.eq.s32.totalorder %s35, 0
      %p308 = por %p306, %p307
      %p309 = scmp.ne.s32.totalorder %s297, %s298
      %p310 = scmp.eq.s32.totalorder %s36, 1
      %p311 = por %p309, %p310
      %p313 = scmp.ne.s32.totalorder %s298, %s312
      %p314 = scmp.eq.s32.totalorder %s36, 0
      %p315 = por %p313, %p314
      %s317 = sadd.s32 %s316, 1
      %p320 = scmp.eq.s32.totalorder %s30, 1
      %p321 = scmp.ne.s32.totalorder %s316, %s318
      %p322 = scmp.eq.s32.totalorder %s30, 0
      %p323 = por %p321, %p322
      %p324 = scmp.ne.s32.totalorder %s316, %s318
      %p325 = scmp.eq.s32.totalorder %s35, 1
      %p326 = por %p324, %p325
      %p327 = scmp.ne.s32.totalorder %s318, %s319
      %p328 = scmp.eq.s32.totalorder %s35, 0
      %p329 = por %p327, %p328
      %p330 = scmp.ne.s32.totalorder %s318, %s319
      %p331 = scmp.eq.s32.totalorder %s36, 1
      %p332 = por %p330, %p331
      %p334 = scmp.ne.s32.totalorder %s319, %s333
      %p335 = scmp.eq.s32.totalorder %s36, 0
      %p336 = por %p334, %p335
      %s338 = sadd.s32 %s337, 1
      %p341 = scmp.eq.s32.totalorder %s30, 1
      %p342 = scmp.ne.s32.totalorder %s337, %s339
      %p343 = scmp.eq.s32.totalorder %s30, 0
      %p344 = por %p342, %p343
      %p345 = scmp.ne.s32.totalorder %s337, %s339
      %p346 = scmp.eq.s32.totalorder %s35, 1
      %p347 = por %p345, %p346
      %p348 = scmp.ne.s32.totalorder %s339, %s340
      %p349 = scmp.eq.s32.totalorder %s35, 0
      %p350 = por %p348, %p349
      %p351 = scmp.ne.s32.totalorder %s339, %s340
      %p352 = scmp.eq.s32.totalorder %s36, 1
      %p353 = por %p351, %p352
      %p355 = scmp.ne.s32.totalorder %s340, %s354
      %p356 = scmp.eq.s32.totalorder %s36, 0
      %p357 = por %p355, %p356
      %s359 = sadd.s32 %s358, 1
      %p362 = scmp.eq.s32.totalorder %s30, 1
      %p363 = scmp.ne.s32.totalorder %s358, %s360
      %p364 = scmp.eq.s32.totalorder %s30, 0
      %p365 = por %p363, %p364
      %p366 = scmp.ne.s32.totalorder %s358, %s360
      %p367 = scmp.eq.s32.totalorder %s35, 1
      %p368 = por %p366, %p367
      %p369 = scmp.ne.s32.totalorder %s360, %s361
      %p370 = scmp.eq.s32.totalorder %s35, 0
      %p371 = por %p369, %p370
      %p372 = scmp.ne.s32.totalorder %s360, %s361
      %p373 = scmp.eq.s32.totalorder %s36, 1
      %p374 = por %p372, %p373
      %p376 = scmp.ne.s32.totalorder %s361, %s375
      %p377 = scmp.eq.s32.totalorder %s36, 0
      %p378 = por %p376, %p377
      %s380 = sadd.s32 %s379, 1
      %p383 = scmp.eq.s32.totalorder %s30, 1
      %p384 = scmp.ne.s32.totalorder %s379, %s381
      %p385 = scmp.eq.s32.totalorder %s30, 0
      %p386 = por %p384, %p385
      %p387 = scmp.ne.s32.totalorder %s379, %s381
      %p388 = scmp.eq.s32.totalorder %s35, 1
      %p389 = por %p387, %p388
      %p390 = scmp.ne.s32.totalorder %s381, %s382
      %p391 = scmp.eq.s32.totalorder %s35, 0
      %p392 = por %p390, %p391
      %p393 = scmp.ne.s32.totalorder %s381, %s382
      %p394 = scmp.eq.s32.totalorder %s36, 1
      %p395 = por %p393, %p394
      %p397 = scmp.ne.s32.totalorder %s382, %s396
      %p398 = scmp.eq.s32.totalorder %s36, 0
      %p399 = por %p397, %p398
      %s401 = sadd.s32 %s400, 1
      %p404 = scmp.eq.s32.totalorder %s30, 1
      %p405 = scmp.ne.s32.totalorder %s400, %s402
      %p406 = scmp.eq.s32.totalorder %s30, 0
      %p407 = por %p405, %p406
      %p408 = scmp.ne.s32.totalorder %s400, %s402
      %p409 = scmp.eq.s32.totalorder %s35, 1
      %p410 = por %p408, %p409
      %p411 = scmp.ne.s32.totalorder %s402, %s403
      %p412 = scmp.eq.s32.totalorder %s35, 0
      %p413 = por %p411, %p412
      %p414 = scmp.ne.s32.totalorder %s402, %s403
      %p415 = scmp.eq.s32.totalorder %s36, 1
      %p416 = por %p414, %p415
      %p418 = scmp.ne.s32.totalorder %s403, %s417
      %p419 = scmp.eq.s32.totalorder %s36, 0
      %p420 = por %p418, %p419
      %s421 = ssub.s32 %s30, %s37
      %p422 = scmp.eq.s32.totalorder %s421, 0
      %s424 = sadd.s32 %s423, 1
      %s425 = scalar_select %p422, %s423, %s424
      %p428 = pneg %p422
      %p429 = scmp.eq.s32.totalorder %s30, 1
      %p430 = por %p428, %p429
      %p431 = scmp.ne.s32.totalorder %s423, %s426
      %p432 = scmp.eq.s32.totalorder %s30, 0
      %p433 = por %p431, %p432
      %p434 = scmp.ne.s32.totalorder %s423, %s426
      %p435 = scmp.eq.s32.totalorder %s35, 1
      %p436 = por %p434, %p435
      %p437 = scmp.ne.s32.totalorder %s426, %s427
      %p438 = scmp.eq.s32.totalorder %s35, 0
      %p439 = por %p437, %p438
      %p440 = scmp.ne.s32.totalorder %s426, %s427
      %p441 = scmp.eq.s32.totalorder %s36, 1
      %p442 = por %p440, %p441
      %p444 = scmp.ne.s32.totalorder %s427, %s443
      %p445 = scmp.eq.s32.totalorder %s36, 0
      %p446 = por %p444, %p445
      %p447 = scmp.le.s32.totalorder 1, %s30
      %p448 = scmp.lt.s32.totalorder %s30, 3
      %p449 = pnand %p447, %p448
      %p450 = pneg %p449
      // Predicated region
      $region9: #{tpu_custom_call.1} parent=5 // pred_check
        _
      $region10: #{tpu_custom_call.1} parent=5 // pred_check_branch
        %452 = sbr.rel (%p449) target = $region12
      $region11: #{tpu_custom_call.1} parent=5 // pred_region
        %s453 = ssub.s32 %s30, 1
        // Predicated region
        $region13: #{tpu_custom_call.1} parent=11 // pred_check
          %p454 = pneg %p77
        $region14: #{tpu_custom_call.1} parent=11 // pred_check_branch
          %456 = sbr.rel (%p454) target = $region16
        $region15: #{tpu_custom_call.1} parent=11 // pred_region
          %458 = vsyncadd [#allocation5], 0
          %s460 = sshll.u32 %s1, 4
          %s461 = int_to_ptr.hbm [resolvable:$true] %s460
          %s462 = sshll.u32 [#allocation4], 4
          %s463 = int_to_ptr.vmem [resolvable:$true] %s462
          %465 = dma.hbm_to_vmem [thread:$0]  %s461, 128, %s463, [#allocation5]
        $region16: #{tpu_custom_call.1} parent=11 // pred_fallthru
          _
        // Predicated region
        $region17: #{tpu_custom_call.1} parent=11 // pred_check
          %p466 = pneg %p98
        $region18: #{tpu_custom_call.1} parent=11 // pred_check_branch
          %468 = sbr.rel (%p466) target = $region20
        $region19: #{tpu_custom_call.1} parent=11 // pred_region
          _
        $region20: #{tpu_custom_call.1} parent=11 // pred_fallthru
          _
        // Predicated region
        $region21: #{tpu_custom_call.1} parent=11 // pred_check
          %p469 = pneg %p119
        $region22: #{tpu_custom_call.1} parent=11 // pred_check_branch
          %471 = sbr.rel (%p469) target = $region24
        $region23: #{tpu_custom_call.1} parent=11 // pred_region
          _
        $region24: #{tpu_custom_call.1} parent=11 // pred_fallthru
          _
        // Predicated region
        $region25: #{tpu_custom_call.1} parent=11 // pred_check
          %p472 = pneg %p140
        $region26: #{tpu_custom_call.1} parent=11 // pred_check_branch
          %474 = sbr.rel (%p472) target = $region28
        $region27: #{tpu_custom_call.1} parent=11 // pred_region
          %476 = vsyncadd [#allocation5], 0
          %s477 = sshll.u32 %s4, 4
          %s478 = int_to_ptr.hbm [resolvable:$true] %s477
          %s479 = sshll.u32 [#allocation6], 4
          %s480 = int_to_ptr.vmem [resolvable:$true] %s479
          %485 = dma.hbm_to_vmem [thread:$0]  %s478, 1024, %s480, [#allocation5], 128, 128, 8
        $region28: #{tpu_custom_call.1} parent=11 // pred_fallthru
          _
        // Predicated region
        $region29: #{tpu_custom_call.1} parent=11 // pred_check
          %p486 = pneg %p161
        $region30: #{tpu_custom_call.1} parent=11 // pred_check_branch
          %488 = sbr.rel (%p486) target = $region32
        $region31: #{tpu_custom_call.1} parent=11 // pred_region
          _
        $region32: #{tpu_custom_call.1} parent=11 // pred_fallthru
          _
        // Predicated region
        $region33: #{tpu_custom_call.1} parent=11 // pred_check
          %p489 = pneg %p182
        $region34: #{tpu_custom_call.1} parent=11 // pred_check_branch
          %491 = sbr.rel (%p489) target = $region36
        $region35: #{tpu_custom_call.1} parent=11 // pred_region
          %493 = vsyncadd [#allocation8], 0
          %s494 = sshll.u32 %s6, 4
          %s495 = int_to_ptr.hbm [resolvable:$true] %s494
          %s496 = sshll.u32 [#allocation7], 4
          %s497 = int_to_ptr.vmem [resolvable:$true] %s496
          %502 = dma.hbm_to_vmem [thread:$0]  %s495, 1024, %s497, [#allocation8], 128, 128, 8
        $region36: #{tpu_custom_call.1} parent=11 // pred_fallthru
          _
        // Predicated region
        $region37: #{tpu_custom_call.1} parent=11 // pred_check
          %p503 = pneg %p203
        $region38: #{tpu_custom_call.1} parent=11 // pred_check_branch
          %505 = sbr.rel (%p503) target = $region40
        $region39: #{tpu_custom_call.1} parent=11 // pred_region
          _
        $region40: #{tpu_custom_call.1} parent=11 // pred_fallthru
          _
        // Predicated region
        $region41: #{tpu_custom_call.1} parent=11 // pred_check
          %p506 = pneg %p224
        $region42: #{tpu_custom_call.1} parent=11 // pred_check_branch
          %508 = sbr.rel (%p506) target = $region44
        $region43: #{tpu_custom_call.1} parent=11 // pred_region
          %510 = vsyncadd [#allocation8], 0
          %s511 = sshll.u32 %s8, 4
          %s512 = int_to_ptr.hbm [resolvable:$true] %s511
          %s513 = sshll.u32 [#allocation9], 4
          %s514 = int_to_ptr.vmem [resolvable:$true] %s513
          %519 = dma.hbm_to_vmem [thread:$0]  %s512, 1024, %s514, [#allocation8], 128, 128, 8
        $region44: #{tpu_custom_call.1} parent=11 // pred_fallthru
          _
        // Predicated region
        $region45: #{tpu_custom_call.1} parent=11 // pred_check
          %p520 = pneg %p245
        $region46: #{tpu_custom_call.1} parent=11 // pred_check_branch
          %522 = sbr.rel (%p520) target = $region48
        $region47: #{tpu_custom_call.1} parent=11 // pred_region
          _
        $region48: #{tpu_custom_call.1} parent=11 // pred_fallthru
          _
        // Predicated region
        $region49: #{tpu_custom_call.1} parent=11 // pred_check
          %p523 = pneg %p266
        $region50: #{tpu_custom_call.1} parent=11 // pred_check_branch
          %525 = sbr.rel (%p523) target = $region52
        $region51: #{tpu_custom_call.1} parent=11 // pred_region
          %527 = vsyncadd [#allocation11], 0
          %s528 = sshll.u32 %s10, 4
          %s529 = int_to_ptr.hbm [resolvable:$true] %s528
          %s530 = sshll.u32 [#allocation10], 4
          %s531 = int_to_ptr.vmem [resolvable:$true] %s530
          %536 = dma.hbm_to_vmem [thread:$0]  %s529, 512, %s531, [#allocation11], 128, 128, 8
        $region52: #{tpu_custom_call.1} parent=11 // pred_fallthru
          _
        // Predicated region
        $region53: #{tpu_custom_call.1} parent=11 // pred_check
          %p537 = pneg %p287
        $region54: #{tpu_custom_call.1} parent=11 // pred_check_branch
          %539 = sbr.rel (%p537) target = $region56
        $region55: #{tpu_custom_call.1} parent=11 // pred_region
          %541 = vsyncadd [#allocation11], 0
          %s543 = sshll.u32 %s11, 4
          %s544 = int_to_ptr.hbm [resolvable:$true] %s543
          %s545 = sshll.u32 [#allocation12], 4
          %s546 = int_to_ptr.vmem [resolvable:$true] %s545
          %548 = dma.hbm_to_vmem [thread:$0]  %s544, 16, %s546, [#allocation11]
        $region56: #{tpu_custom_call.1} parent=11 // pred_fallthru
          _
        // Predicated region
        $region57: #{tpu_custom_call.1} parent=11 // pred_check
          %p549 = pneg %p308
        $region58: #{tpu_custom_call.1} parent=11 // pred_check_branch
          %551 = sbr.rel (%p549) target = $region60
        $region59: #{tpu_custom_call.1} parent=11 // pred_region
          _
        $region60: #{tpu_custom_call.1} parent=11 // pred_fallthru
          _
        // Predicated region
        $region61: #{tpu_custom_call.1} parent=11 // pred_check
          %p552 = pneg %p329
        $region62: #{tpu_custom_call.1} parent=11 // pred_check_branch
          %554 = sbr.rel (%p552) target = $region64
        $region63: #{tpu_custom_call.1} parent=11 // pred_region
          _
        $region64: #{tpu_custom_call.1} parent=11 // pred_fallthru
          _
        // Predicated region
        $region65: #{tpu_custom_call.1} parent=11 // pred_check
          %p555 = pneg %p350
        $region66: #{tpu_custom_call.1} parent=11 // pred_check_branch
          %557 = sbr.rel (%p555) target = $region68
        $region67: #{tpu_custom_call.1} parent=11 // pred_region
          _
        $region68: #{tpu_custom_call.1} parent=11 // pred_fallthru
          _
        // Predicated region
        $region69: #{tpu_custom_call.1} parent=11 // pred_check
          %p558 = pneg %p371
        $region70: #{tpu_custom_call.1} parent=11 // pred_check_branch
          %560 = sbr.rel (%p558) target = $region72
        $region71: #{tpu_custom_call.1} parent=11 // pred_region
          _
        $region72: #{tpu_custom_call.1} parent=11 // pred_fallthru
          _
        // Predicated region
        $region73: #{tpu_custom_call.1} parent=11 // pred_check
          %p561 = pneg %p392
        $region74: #{tpu_custom_call.1} parent=11 // pred_check_branch
          %563 = sbr.rel (%p561) target = $region76
        $region75: #{tpu_custom_call.1} parent=11 // pred_region
          _
        $region76: #{tpu_custom_call.1} parent=11 // pred_fallthru
          _
        // Predicated region
        $region77: #{tpu_custom_call.1} parent=11 // pred_check
          %p564 = pneg %p413
        $region78: #{tpu_custom_call.1} parent=11 // pred_check_branch
          %566 = sbr.rel (%p564) target = $region80
        $region79: #{tpu_custom_call.1} parent=11 // pred_region
          _
        $region80: #{tpu_custom_call.1} parent=11 // pred_fallthru
          _
      $region12: #{tpu_custom_call.1} parent=5 // pred_fallthru
        _
      %p567 = scmp.lt.s32.totalorder %s30, 2
      // Predicated region
      $region81: #{tpu_custom_call.1} parent=5 // pred_check
        %p568 = pneg %p567
      $region82: #{tpu_custom_call.1} parent=5 // pred_check_branch
        %570 = sbr.rel (%p568) target = $region84
      $region83: #{tpu_custom_call.1} parent=5 // pred_region
        // Predicated region
        $region85: #{tpu_custom_call.1} parent=83 // pred_check
          %p571 = pneg %p50
        $region86: #{tpu_custom_call.1} parent=83 // pred_check_branch
          %573 = sbr.rel (%p571) target = $region88
        $region87: #{tpu_custom_call.1} parent=83 // pred_region
          %s574 = sand.u32 %s40, 1
          %s575 = scalar_lea.sflag [#allocation3], %s574
          %s576 = sand.u32 %s40, 1
          %s577 = smul.addr %s576, 8
          %s578 = scalar_lea.vmem [#allocation2], %s577
          %580 = vsyncadd %s575, 0
          %s581 = smul.addr %s30, 8
          %s582 = scalar_lea.hbm %s0, %s581
          %s584 = sshll.u32 %s582, 4
          %s585 = int_to_ptr.hbm [resolvable:$true] %s584
          %s586 = sshll.u32 %s578, 4
          %s587 = int_to_ptr.vmem [resolvable:$true] %s586
          %589 = dma.hbm_to_vmem [thread:$0]  %s585, 128, %s587, %s575
        $region88: #{tpu_custom_call.1} parent=83 // pred_fallthru
          _
      $region84: #{tpu_custom_call.1} parent=5 // pred_fallthru
        _
      %p590 = scmp.le.s32.totalorder 1, %s30
      %p591 = scmp.lt.s32.totalorder %s30, 3
      %p592 = pnand %p590, %p591
      %p593 = pneg %p592
      // Predicated region
      $region89: #{tpu_custom_call.1} parent=5 // pred_check
        _
      $region90: #{tpu_custom_call.1} parent=5 // pred_check_branch
        %595 = sbr.rel (%p592) target = $region92
      $region91: #{tpu_custom_call.1} parent=5 // pred_region
        %s596 = ssub.s32 %s30, 1
        %s597 = sand.u32 %s43, 1
        %s598 = scalar_lea.sflag [#allocation3], %s597
        %s599 = sand.u32 %s43, 1
        %s600 = smul.addr %s599, 8
        %s601 = scalar_lea.vmem [#allocation2], %s600
        // Predicated region
        $region93: #{tpu_custom_call.1} parent=91 // pred_check
          %p602 = pneg %p56
        $region94: #{tpu_custom_call.1} parent=91 // pred_check_branch
          %604 = sbr.rel (%p602) target = $region96
        $region95: #{tpu_custom_call.1} parent=91 // pred_region
          %606 = dma.done %s598, 128
        $region96: #{tpu_custom_call.1} parent=91 // pred_fallthru
          _
        // Predicated region
        $region97: #{tpu_custom_call.1} parent=91 // pred_check
          %p607 = pneg %p77
        $region98: #{tpu_custom_call.1} parent=91 // pred_check_branch
          %609 = sbr.rel (%p607) target = $region100
        $region99: #{tpu_custom_call.1} parent=91 // pred_region
          %611 = dma.done [#allocation5], 128
        $region100: #{tpu_custom_call.1} parent=91 // pred_fallthru
          _
        // Predicated region
        $region101: #{tpu_custom_call.1} parent=91 // pred_check
          %p612 = pneg %p140
        $region102: #{tpu_custom_call.1} parent=91 // pred_check_branch
          %614 = sbr.rel (%p612) target = $region104
        $region103: #{tpu_custom_call.1} parent=91 // pred_region
          %616 = dma.done [#allocation5], 1024
        $region104: #{tpu_custom_call.1} parent=91 // pred_fallthru
          _
        // Predicated region
        $region105: #{tpu_custom_call.1} parent=91 // pred_check
          %p617 = pneg %p182
        $region106: #{tpu_custom_call.1} parent=91 // pred_check_branch
          %619 = sbr.rel (%p617) target = $region108
        $region107: #{tpu_custom_call.1} parent=91 // pred_region
          %621 = dma.done [#allocation8], 1024
        $region108: #{tpu_custom_call.1} parent=91 // pred_fallthru
          _
        // Predicated region
        $region109: #{tpu_custom_call.1} parent=91 // pred_check
          %p622 = pneg %p224
        $region110: #{tpu_custom_call.1} parent=91 // pred_check_branch
          %624 = sbr.rel (%p622) target = $region112
        $region111: #{tpu_custom_call.1} parent=91 // pred_region
          %626 = dma.done [#allocation8], 1024
        $region112: #{tpu_custom_call.1} parent=91 // pred_fallthru
          _
        // Predicated region
        $region113: #{tpu_custom_call.1} parent=91 // pred_check
          %p627 = pneg %p266
        $region114: #{tpu_custom_call.1} parent=91 // pred_check_branch
          %629 = sbr.rel (%p627) target = $region116
        $region115: #{tpu_custom_call.1} parent=91 // pred_region
          %631 = dma.done [#allocation11], 512
        $region116: #{tpu_custom_call.1} parent=91 // pred_fallthru
          _
        // Predicated region
        $region117: #{tpu_custom_call.1} parent=91 // pred_check
          %p632 = pneg %p287
        $region118: #{tpu_custom_call.1} parent=91 // pred_check_branch
          %634 = sbr.rel (%p632) target = $region120
        $region119: #{tpu_custom_call.1} parent=91 // pred_region
          %636 = dma.done [#allocation11], 16
        $region120: #{tpu_custom_call.1} parent=91 // pred_fallthru
          _
        %s637 = sand.u32 %s43, 1
        %s638 = scalar_lea.sflag [#allocation3], %s637
        %s639 = sand.u32 %s43, 1
        %s640 = smul.addr %s639, 8
        %s641 = scalar_lea.vmem [#allocation2], %s640
        %p642 = pneg %p56
        %p643 = pneg %p53
        %p644 = pneg %p77
        %p645 = pneg %p74
        %p646 = pneg %p98
        %p647 = pneg %p95
        %p648 = pneg %p119
        %p649 = pneg %p116
        %p650 = pneg %p140
        %p651 = pneg %p137
        %p652 = pneg %p161
        %p653 = pneg %p158
        %p654 = pneg %p182
        %p655 = pneg %p179
        %p656 = pneg %p203
        %p657 = pneg %p200
        %p658 = pneg %p224
        %p659 = pneg %p221
        %p660 = pneg %p245
        %p661 = pneg %p242
        %p662 = pneg %p266
        %p663 = pneg %p263
        %p664 = pneg %p287
        %p665 = pneg %p284
        %p666 = pneg %p308
        %p667 = pneg %p305
        %p668 = pneg %p329
        %p669 = pneg %p326
        %p670 = pneg %p350
        %p671 = pneg %p347
        %p672 = pneg %p371
        %p673 = pneg %p368
        %p674 = pneg %p392
        %p675 = pneg %p389
        %p676 = pneg %p413
        %p677 = pneg %p410
        %p678 = pneg %p439
        %p679 = pneg %p436
        %p680 = scmp.lt.s32.totalorder %s35, 1
        %s681 = scalar_select %p680, %s35, 1
        %s682 = smul.addr %s681, 8
        %s683 = scalar_lea.vmem %s18, %s682
        %p684 = scmp.lt.s32.totalorder %s35, 1
        %s685 = scalar_select %p684, %s35, 1
        %s686 = smul.addr %s685, 8
        %s687 = scalar_lea.vmem %s18, %s686
        %v688 = vld [vmem:[%s601] sm:$0xff]
        %v689 = vld [vmem:[%s2] sm:$0xff]
        %v690 = vld [vmem:[%s2 + $0x8] sm:$0xff]
        %v691 = vld [vmem:[%s2 + $0x10] sm:$0xff]
        %v692 = vld [vmem:[%s2 + $0x18] sm:$0xff]
        %v693 = vld [vmem:[%s3] sm:$0x1]
        %v695 = vperm.slane %v693, 0
        %vm697 = vcmask 261120
        %v699 = vsel %vm697, %v688, 0
        %701 = vmatpush.msra.mxu0 0.0
        %702 = vmatpush.msra.mxu0 0.0
        %703 = vmatpush.msra.mxu0 0.0
        %704 = vmatpush.msra.mxu0 0.0
        %705 = vmatpush.msra.mxu0 0.0
        %706 = vmatpush.msra.mxu0 0.0
        %707 = vmatpush.msra.mxu0 0.0
        %708 = vmatpush.msra.mxu0 0.0
        %709 = vmatpush.msra.mxu0 0.0
        %710 = vmatpush.msra.mxu0 0.0
        %711 = vmatpush.msra.mxu0 0.0
        %712 = vmatpush.msra.mxu0 0.0
        %713 = vmatpush.msra.mxu0 %v692
        %714 = vmatpush.msra.mxu0 %v691
        %715 = vmatpush.msra.mxu0 %v690
        %716 = vmatpush.msra.mxu0 %v689
        %717 = vmatmul.f32.gmra.mxu0 %v699
        %v718 = vpop.f32.mrf.mxu0
        %v719 = vadd.f32 %v695, %v718
        %720 = vdwg.mxu0
        %vm721 = vcmask 130048
        %v723 = vsel %vm721, %v719, 0
        %725 = vmatpush.xpose.msra.mxu0 0.0
        %726 = vmatpush.xpose.msra.mxu0 0.0
        %727 = vmatpush.xpose.msra.mxu0 0.0
        %728 = vmatpush.xpose.msra.mxu0 0.0
        %729 = vmatpush.xpose.msra.mxu0 0.0
        %730 = vmatpush.xpose.msra.mxu0 0.0
        %731 = vmatpush.xpose.msra.mxu0 0.0
        %732 = vmatpush.xpose.msra.mxu0 0.0
        %733 = vmatpush.xpose.msra.mxu0 0.0
        %734 = vmatpush.xpose.msra.mxu0 0.0
        %735 = vmatpush.xpose.msra.mxu0 0.0
        %736 = vmatpush.xpose.msra.mxu0 0.0
        %737 = vmatpush.xpose.msra.mxu0 0.0
        %738 = vmatpush.xpose.msra.mxu0 0.0
        %739 = vmatpush.xpose.msra.mxu0 0.0
        %740 = vmatpush.xpose.msra.mxu0 %v723
        %741 = vmatmul.f32.gmra.mxu0 %v723
        %v742 = vpop.f32.mrf.mxu0
        %v743 = vadd.f32 0.0, %v742
        %744 = vdwg.mxu0
        %vm745 = vcmask 64512
        %v746 = vsel %vm745, %v743, -inf
        %747 = vmax.xlane.f32.xlu0 %v746
        %v748 = vpop.xlane.xlu0 %747
        %v749 = vsub.f32 %v743, %v748
        %v750 = vmul.f32 %v749, 1.442695
        %v751 = vpow.pop %v750
        %v752 = vsel %vm745, %v751, 0.0
        %753 = vadd.xlane.f32.xlu0 %v752
        %v754 = vpop.xlane.xlu0 %753
        %v755 = vrcp.pop %v754
        %v756 = vmul.f32 %v751, %v755
        %757 = vrot.lane.b32.xlu0 %v719, 96
        %v758 = vpop.permute.xlu0 %757
        %v761 = vsel %vm745, %v756, 0
        %763 = vmatpush.msra.mxu0 0.0
        %764 = vmatpush.msra.mxu0 0.0
        %765 = vmatpush.msra.mxu0 0.0
        %766 = vmatpush.msra.mxu0 0.0
        %767 = vmatpush.msra.mxu0 0.0
        %768 = vmatpush.msra.mxu0 0.0
        %769 = vmatpush.msra.mxu0 0.0
        %770 = vmatpush.msra.mxu0 0.0
        %771 = vmatpush.msra.mxu0 0.0
        %772 = vmatpush.msra.mxu0 0.0
        %773 = vmatpush.msra.mxu0 0.0
        %774 = vmatpush.msra.mxu0 0.0
        %775 = vmatpush.msra.mxu0 0.0
        %776 = vmatpush.msra.mxu0 0.0
        %777 = vmatpush.msra.mxu0 0.0
        %778 = vmatpush.msra.mxu0 %v758
        %779 = vmatmul.f32.gmra.mxu0 %v761
        %v780 = vpop.f32.mrf.mxu0
        %v781 = vadd.f32 0.0, %v780
        %782 = vdwg.mxu0
        %v783 = vld [vmem:[#allocation6] sm:$0xff]
        %v784 = vld [vmem:[#allocation6 + $0x8] sm:$0xff]
        %785 = vrot.lane.b32.xlu0 %v719, 112
        %v786 = vpop.permute.xlu0 %785
        %v787 = vsel %vm721, %v786, 0
        %789 = vmatpush.xpose.msra.mxu0 0.0
        %790 = vmatpush.xpose.msra.mxu0 0.0
        %791 = vmatpush.xpose.msra.mxu0 0.0
        %792 = vmatpush.xpose.msra.mxu0 0.0
        %793 = vmatpush.xpose.msra.mxu0 0.0
        %794 = vmatpush.xpose.msra.mxu0 0.0
        %795 = vmatpush.xpose.msra.mxu0 0.0
        %796 = vmatpush.xpose.msra.mxu0 0.0
        %797 = vmatpush.xpose.msra.mxu0 0.0
        %798 = vmatpush.xpose.msra.mxu0 0.0
        %799 = vmatpush.xpose.msra.mxu0 0.0
        %800 = vmatpush.xpose.msra.mxu0 0.0
        %801 = vmatpush.xpose.msra.mxu0 0.0
        %802 = vmatpush.xpose.msra.mxu0 0.0
        %803 = vmatpush.xpose.msra.mxu0 0.0
        %804 = vmatpush.xpose.msra.mxu0 %v787
        %805 = vmatmul.f32.gmra.mxu0 %v787
        %v806 = vpop.f32.mrf.mxu0
        %v807 = vadd.f32 0.0, %v806
        %808 = vdwg.mxu0
        %v809 = vsel %vm745, %v807, -inf
        %810 = vmax.xlane.f32.xlu0 %v809
        %v811 = vpop.xlane.xlu0 %810
        %v812 = vsub.f32 %v807, %v811
        %v813 = vmul.f32 %v812, 1.442695
        %v814 = vpow.pop %v813
        %v815 = vsel %vm745, %v814, 0.0
        %816 = vadd.xlane.f32.xlu0 %v815
        %v817 = vpop.xlane.xlu0 %816
        %v818 = vrcp.pop %v817
        %v819 = vmul.f32 %v814, %v818
        %820 = vrot.lane.b32.xlu0 %v719, 80
        %v821 = vpop.permute.xlu0 %820
        %v824 = vsel %vm745, %v819, 0
        %826 = vmatpush.msra.mxu0 0.0
        %827 = vmatpush.msra.mxu0 0.0
        %828 = vmatpush.msra.mxu0 0.0
        %829 = vmatpush.msra.mxu0 0.0
        %830 = vmatpush.msra.mxu0 0.0
        %831 = vmatpush.msra.mxu0 0.0
        %832 = vmatpush.msra.mxu0 0.0
        %833 = vmatpush.msra.mxu0 0.0
        %834 = vmatpush.msra.mxu0 0.0
        %835 = vmatpush.msra.mxu0 0.0
        %836 = vmatpush.msra.mxu0 0.0
        %837 = vmatpush.msra.mxu0 0.0
        %838 = vmatpush.msra.mxu0 0.0
        %839 = vmatpush.msra.mxu0 0.0
        %840 = vmatpush.msra.mxu0 0.0
        %841 = vmatpush.msra.mxu0 %v821
        %842 = vmatmul.f32.gmra.mxu0 %v824
        %v843 = vpop.f32.mrf.mxu0
        %v844 = vadd.f32 0.0, %v843
        %845 = vdwg.mxu0
        %v846 = vld [vmem:[#allocation6 + $0x10] sm:$0xff]
        %v847 = vld [vmem:[#allocation6 + $0x18] sm:$0xff]
        %v849 = vsel %vm721, %v844, 0
        %851 = vmatpush.msra.mxu0 0.0
        %852 = vmatpush.msra.mxu0 0.0
        %853 = vmatpush.msra.mxu0 0.0
        %854 = vmatpush.msra.mxu0 0.0
        %855 = vmatpush.msra.mxu0 0.0
        %856 = vmatpush.msra.mxu0 0.0
        %857 = vmatpush.msra.mxu0 0.0
        %858 = vmatpush.msra.mxu0 0.0
        %859 = vmatpush.msra.mxu0 0.0
        %860 = vmatpush.msra.mxu0 0.0
        %861 = vmatpush.msra.mxu0 0.0
        %862 = vmatpush.msra.mxu0 0.0
        %863 = vmatpush.msra.mxu0 0.0
        %864 = vmatpush.msra.mxu0 0.0
        %865 = vmatpush.msra.mxu0 %v847
        %866 = vmatpush.msra.mxu0 %v846
        %867 = vmatmul.f32.gmra.mxu0 %v849
        %v868 = vpop.f32.mrf.mxu0
        %v869 = vadd.f32 0.0, %v868
        %870 = vdwg.mxu0
        %v872 = vsel %vm721, %v781, 0
        %874 = vmatpush.msra.mxu0 0.0
        %875 = vmatpush.msra.mxu0 0.0
        %876 = vmatpush.msra.mxu0 0.0
        %877 = vmatpush.msra.mxu0 0.0
        %878 = vmatpush.msra.mxu0 0.0
        %879 = vmatpush.msra.mxu0 0.0
        %880 = vmatpush.msra.mxu0 0.0
        %881 = vmatpush.msra.mxu0 0.0
        %882 = vmatpush.msra.mxu0 0.0
        %883 = vmatpush.msra.mxu0 0.0
        %884 = vmatpush.msra.mxu0 0.0
        %885 = vmatpush.msra.mxu0 0.0
        %886 = vmatpush.msra.mxu0 0.0
        %887 = vmatpush.msra.mxu0 0.0
        %888 = vmatpush.msra.mxu0 %v784
        %889 = vmatpush.msra.mxu0 %v783
        %890 = vmatmul.f32.gmra.mxu0 %v872
        %v891 = vpop.f32.mrf.mxu0
        %v892 = vadd.f32 %v869, %v891
        %893 = vdwg.mxu0
        %v894 = vld [vmem:[%s5] sm:$0x1]
        %v896 = vperm.slane %v894, 0
        %v898 = vadd.f32 %v892, %v896
        %v899 = vadd.f32 %v898, %v688
        %v900 = vsel %vm697, %v899, 0.0
        %901 = vadd.xlane.f32.xlu0 %v900
        %v902 = vpop.xlane.xlu0 %901
        %v903 = vrcp.pop 32.0
        %v904 = vmul.f32 32.0, %v903
        %v905 = vsub.f32 1.0, %v904
        %v906 = vmul.f32 %v903, %v905
        %v907 = vadd.f32 %v903, %v906
        %vm908 = vweird.f32 %v903
        %v909 = vsel %vm908, %v903, %v907
        %v910 = vmul.f32 %v902, %v909
        %v911 = vsub.f32 %v899, %v910
        %v912 = vmul.f32 %v911, %v911
        %v913 = vsel %vm697, %v912, 0.0
        %914 = vadd.xlane.f32.xlu0 %v913
        %v915 = vpop.xlane.xlu0 %914
        %v916 = vmul.f32 %v915, %v909
        %v917 = vadd.f32 %v916, 1e-05
        %v918 = vrsqrt.pop %v917
        %v919 = vmul.f32 %v918, %v917
        %v920 = vmul.f32 %v919, %v918
        %v921 = vmul.f32 0.5, %v920
        %v922 = vsub.f32 1.5, %v921
        %v923 = vmul.f32 %v918, %v922
        %vm924 = vweird.f32 %v917
        %vm925 = vweird.f32 %v918
        %vm926 = vmor %vm924, %vm925
        %v927 = vsel %vm926, %v918, %v923
        %v928 = vmul.f32 %v911, %v927
        %v929 = vld [vmem:[#allocation7] sm:$0xff]
        %v930 = vld [vmem:[#allocation7 + $0x8] sm:$0xff]
        %v931 = vld [vmem:[#allocation7 + $0x10] sm:$0xff]
        %v932 = vld [vmem:[#allocation7 + $0x18] sm:$0xff]
        %v933 = vld [vmem:[%s7] sm:$0x1]
        %v935 = vperm.slane %v933, 0
        %v938 = vsel %vm697, %v928, 0
        %940 = vmatpush.msra.mxu0 0.0
        %941 = vmatpush.msra.mxu0 0.0
        %942 = vmatpush.msra.mxu0 0.0
        %943 = vmatpush.msra.mxu0 0.0
        %944 = vmatpush.msra.mxu0 0.0
        %945 = vmatpush.msra.mxu0 0.0
        %946 = vmatpush.msra.mxu0 0.0
        %947 = vmatpush.msra.mxu0 0.0
        %948 = vmatpush.msra.mxu0 0.0
        %949 = vmatpush.msra.mxu0 0.0
        %950 = vmatpush.msra.mxu0 0.0
        %951 = vmatpush.msra.mxu0 0.0
        %952 = vmatpush.msra.mxu0 %v932
        %953 = vmatpush.msra.mxu0 %v931
        %954 = vmatpush.msra.mxu0 %v930
        %955 = vmatpush.msra.mxu0 %v929
        %956 = vmatmul.f32.gmra.mxu0 %v938
        %v957 = vpop.f32.mrf.mxu0
        %v958 = vadd.f32 %v935, %v957
        %959 = vdwg.mxu0
        %v960 = vmax.f32 %v958, 0.0
        %v961 = vld [vmem:[#allocation9] sm:$0xff]
        %v962 = vld [vmem:[#allocation9 + $0x8] sm:$0xff]
        %v963 = vld [vmem:[#allocation9 + $0x10] sm:$0xff]
        %v964 = vld [vmem:[#allocation9 + $0x18] sm:$0xff]
        %v965 = vld [vmem:[%s9] sm:$0x1]
        %v967 = vperm.slane %v965, 0
        %v970 = vsel %vm697, %v960, 0
        %972 = vmatpush.msra.mxu0 0.0
        %973 = vmatpush.msra.mxu0 0.0
        %974 = vmatpush.msra.mxu0 0.0
        %975 = vmatpush.msra.mxu0 0.0
        %976 = vmatpush.msra.mxu0 0.0
        %977 = vmatpush.msra.mxu0 0.0
        %978 = vmatpush.msra.mxu0 0.0
        %979 = vmatpush.msra.mxu0 0.0
        %980 = vmatpush.msra.mxu0 0.0
        %981 = vmatpush.msra.mxu0 0.0
        %982 = vmatpush.msra.mxu0 0.0
        %983 = vmatpush.msra.mxu0 0.0
        %984 = vmatpush.msra.mxu0 %v964
        %985 = vmatpush.msra.mxu0 %v963
        %986 = vmatpush.msra.mxu0 %v962
        %987 = vmatpush.msra.mxu0 %v961
        %988 = vmatmul.f32.gmra.mxu0 %v970
        %v989 = vpop.f32.mrf.mxu0
        %v990 = vadd.f32 %v967, %v989
        %991 = vdwg.mxu0
        %v992 = vadd.f32 %v990, %v928
        %v993 = vsel %vm697, %v992, 0.0
        %994 = vadd.xlane.f32.xlu0 %v993
        %v995 = vpop.xlane.xlu0 %994
        %v996 = vmul.f32 %v995, %v909
        %v997 = vsub.f32 %v992, %v996
        %v998 = vmul.f32 %v997, %v997
        %v999 = vsel %vm697, %v998, 0.0
        %1000 = vadd.xlane.f32.xlu0 %v999
        %v1001 = vpop.xlane.xlu0 %1000
        %v1002 = vmul.f32 %v1001, %v909
        %v1003 = vadd.f32 %v1002, 1e-05
        %v1004 = vrsqrt.pop %v1003
        %v1005 = vmul.f32 %v1004, %v1003
        %v1006 = vmul.f32 %v1005, %v1004
        %v1007 = vmul.f32 0.5, %v1006
        %v1008 = vsub.f32 1.5, %v1007
        %v1009 = vmul.f32 %v1004, %v1008
        %vm1010 = vweird.f32 %v1003
        %vm1011 = vweird.f32 %v1004
        %vm1012 = vmor %vm1010, %vm1011
        %v1013 = vsel %vm1012, %v1004, %v1009
        %v1014 = vmul.f32 %v997, %v1013
        %s1015 = scalar_lea.vmem %s2, 32
        %v1016 = vld [vmem:[%s1015] sm:$0xff]
        %v1017 = vld [vmem:[%s1015 + $0x8] sm:$0xff]
        %v1018 = vld [vmem:[%s1015 + $0x10] sm:$0xff]
        %v1019 = vld [vmem:[%s1015 + $0x18] sm:$0xff]
        %s1020 = scalar_lea.vmem %s3, 1
        %v1021 = vld [vmem:[%s1020] sm:$0x1]
        %v1023 = vperm.slane %v1021, 0
        %v1026 = vsel %vm697, %v1014, 0
        %1028 = vmatpush.msra.mxu0 0.0
        %1029 = vmatpush.msra.mxu0 0.0
        %1030 = vmatpush.msra.mxu0 0.0
        %1031 = vmatpush.msra.mxu0 0.0
        %1032 = vmatpush.msra.mxu0 0.0
        %1033 = vmatpush.msra.mxu0 0.0
        %1034 = vmatpush.msra.mxu0 0.0
        %1035 = vmatpush.msra.mxu0 0.0
        %1036 = vmatpush.msra.mxu0 0.0
        %1037 = vmatpush.msra.mxu0 0.0
        %1038 = vmatpush.msra.mxu0 0.0
        %1039 = vmatpush.msra.mxu0 0.0
        %1040 = vmatpush.msra.mxu0 %v1019
        %1041 = vmatpush.msra.mxu0 %v1018
        %1042 = vmatpush.msra.mxu0 %v1017
        %1043 = vmatpush.msra.mxu0 %v1016
        %1044 = vmatmul.f32.gmra.mxu0 %v1026
        %v1045 = vpop.f32.mrf.mxu0
        %v1046 = vadd.f32 %v1023, %v1045
        %1047 = vdwg.mxu0
        %v1049 = vsel %vm721, %v1046, 0
        %1051 = vmatpush.xpose.msra.mxu0 0.0
        %1052 = vmatpush.xpose.msra.mxu0 0.0
        %1053 = vmatpush.xpose.msra.mxu0 0.0
        %1054 = vmatpush.xpose.msra.mxu0 0.0
        %1055 = vmatpush.xpose.msra.mxu0 0.0
        %1056 = vmatpush.xpose.msra.mxu0 0.0
        %1057 = vmatpush.xpose.msra.mxu0 0.0
        %1058 = vmatpush.xpose.msra.mxu0 0.0
        %1059 = vmatpush.xpose.msra.mxu0 0.0
        %1060 = vmatpush.xpose.msra.mxu0 0.0
        %1061 = vmatpush.xpose.msra.mxu0 0.0
        %1062 = vmatpush.xpose.msra.mxu0 0.0
        %1063 = vmatpush.xpose.msra.mxu0 0.0
        %1064 = vmatpush.xpose.msra.mxu0 0.0
        %1065 = vmatpush.xpose.msra.mxu0 0.0
        %1066 = vmatpush.xpose.msra.mxu0 %v1049
        %1067 = vmatmul.f32.gmra.mxu0 %v1049
        %v1068 = vpop.f32.mrf.mxu0
        %v1069 = vadd.f32 0.0, %v1068
        %1070 = vdwg.mxu0
        %v1071 = vsel %vm745, %v1069, -inf
        %1072 = vmax.xlane.f32.xlu0 %v1071
        %v1073 = vpop.xlane.xlu0 %1072
        %v1074 = vsub.f32 %v1069, %v1073
        %v1075 = vmul.f32 %v1074, 1.442695
        %v1076 = vpow.pop %v1075
        %v1077 = vsel %vm745, %v1076, 0.0
        %1078 = vadd.xlane.f32.xlu0 %v1077
        %v1079 = vpop.xlane.xlu0 %1078
        %v1080 = vrcp.pop %v1079
        %v1081 = vmul.f32 %v1076, %v1080
        %1082 = vrot.lane.b32.xlu0 %v1046, 96
        %v1083 = vpop.permute.xlu0 %1082
        %v1086 = vsel %vm745, %v1081, 0
        %1088 = vmatpush.msra.mxu0 0.0
        %1089 = vmatpush.msra.mxu0 0.0
        %1090 = vmatpush.msra.mxu0 0.0
        %1091 = vmatpush.msra.mxu0 0.0
        %1092 = vmatpush.msra.mxu0 0.0
        %1093 = vmatpush.msra.mxu0 0.0
        %1094 = vmatpush.msra.mxu0 0.0
        %1095 = vmatpush.msra.mxu0 0.0
        %1096 = vmatpush.msra.mxu0 0.0
        %1097 = vmatpush.msra.mxu0 0.0
        %1098 = vmatpush.msra.mxu0 0.0
        %1099 = vmatpush.msra.mxu0 0.0
        %1100 = vmatpush.msra.mxu0 0.0
        %1101 = vmatpush.msra.mxu0 0.0
        %1102 = vmatpush.msra.mxu0 0.0
        %1103 = vmatpush.msra.mxu0 %v1083
        %1104 = vmatmul.f32.gmra.mxu0 %v1086
        %v1105 = vpop.f32.mrf.mxu0
        %v1106 = vadd.f32 0.0, %v1105
        %1107 = vdwg.mxu0
        %s1108 = scalar_lea.vmem [#allocation6], 32
        %v1109 = vld [vmem:[%s1108] sm:$0xff]
        %v1110 = vld [vmem:[%s1108 + $0x8] sm:$0xff]
        %1111 = vrot.lane.b32.xlu0 %v1046, 112
        %v1112 = vpop.permute.xlu0 %1111
        %v1113 = vsel %vm721, %v1112, 0
        %1115 = vmatpush.xpose.msra.mxu0 0.0
        %1116 = vmatpush.xpose.msra.mxu0 0.0
        %1117 = vmatpush.xpose.msra.mxu0 0.0
        %1118 = vmatpush.xpose.msra.mxu0 0.0
        %1119 = vmatpush.xpose.msra.mxu0 0.0
        %1120 = vmatpush.xpose.msra.mxu0 0.0
        %1121 = vmatpush.xpose.msra.mxu0 0.0
        %1122 = vmatpush.xpose.msra.mxu0 0.0
        %1123 = vmatpush.xpose.msra.mxu0 0.0
        %1124 = vmatpush.xpose.msra.mxu0 0.0
        %1125 = vmatpush.xpose.msra.mxu0 0.0
        %1126 = vmatpush.xpose.msra.mxu0 0.0
        %1127 = vmatpush.xpose.msra.mxu0 0.0
        %1128 = vmatpush.xpose.msra.mxu0 0.0
        %1129 = vmatpush.xpose.msra.mxu0 0.0
        %1130 = vmatpush.xpose.msra.mxu0 %v1113
        %1131 = vmatmul.f32.gmra.mxu0 %v1113
        %v1132 = vpop.f32.mrf.mxu0
        %v1133 = vadd.f32 0.0, %v1132
        %1134 = vdwg.mxu0
        %v1135 = vsel %vm745, %v1133, -inf
        %1136 = vmax.xlane.f32.xlu0 %v1135
        %v1137 = vpop.xlane.xlu0 %1136
        %v1138 = vsub.f32 %v1133, %v1137
        %v1139 = vmul.f32 %v1138, 1.442695
        %v1140 = vpow.pop %v1139
        %v1141 = vsel %vm745, %v1140, 0.0
        %1142 = vadd.xlane.f32.xlu0 %v1141
        %v1143 = vpop.xlane.xlu0 %1142
        %v1144 = vrcp.pop %v1143
        %v1145 = vmul.f32 %v1140, %v1144
        %1146 = vrot.lane.b32.xlu0 %v1046, 80
        %v1147 = vpop.permute.xlu0 %1146
        %v1150 = vsel %vm745, %v1145, 0
        %1152 = vmatpush.msra.mxu0 0.0
        %1153 = vmatpush.msra.mxu0 0.0
        %1154 = vmatpush.msra.mxu0 0.0
        %1155 = vmatpush.msra.mxu0 0.0
        %1156 = vmatpush.msra.mxu0 0.0
        %1157 = vmatpush.msra.mxu0 0.0
        %1158 = vmatpush.msra.mxu0 0.0
        %1159 = vmatpush.msra.mxu0 0.0
        %1160 = vmatpush.msra.mxu0 0.0
        %1161 = vmatpush.msra.mxu0 0.0
        %1162 = vmatpush.msra.mxu0 0.0
        %1163 = vmatpush.msra.mxu0 0.0
        %1164 = vmatpush.msra.mxu0 0.0
        %1165 = vmatpush.msra.mxu0 0.0
        %1166 = vmatpush.msra.mxu0 0.0
        %1167 = vmatpush.msra.mxu0 %v1147
        %1168 = vmatmul.f32.gmra.mxu0 %v1150
        %v1169 = vpop.f32.mrf.mxu0
        %v1170 = vadd.f32 0.0, %v1169
        %1171 = vdwg.mxu0
        %v1172 = vld [vmem:[%s1108 + $0x10] sm:$0xff]
        %v1173 = vld [vmem:[%s1108 + $0x18] sm:$0xff]
        %v1175 = vsel %vm721, %v1170, 0
        %1177 = vmatpush.msra.mxu0 0.0
        %1178 = vmatpush.msra.mxu0 0.0
        %1179 = vmatpush.msra.mxu0 0.0
        %1180 = vmatpush.msra.mxu0 0.0
        %1181 = vmatpush.msra.mxu0 0.0
        %1182 = vmatpush.msra.mxu0 0.0
        %1183 = vmatpush.msra.mxu0 0.0
        %1184 = vmatpush.msra.mxu0 0.0
        %1185 = vmatpush.msra.mxu0 0.0
        %1186 = vmatpush.msra.mxu0 0.0
        %1187 = vmatpush.msra.mxu0 0.0
        %1188 = vmatpush.msra.mxu0 0.0
        %1189 = vmatpush.msra.mxu0 0.0
        %1190 = vmatpush.msra.mxu0 0.0
        %1191 = vmatpush.msra.mxu0 %v1173
        %1192 = vmatpush.msra.mxu0 %v1172
        %1193 = vmatmul.f32.gmra.mxu0 %v1175
        %v1194 = vpop.f32.mrf.mxu0
        %v1195 = vadd.f32 0.0, %v1194
        %1196 = vdwg.mxu0
        %v1198 = vsel %vm721, %v1106, 0
        %1200 = vmatpush.msra.mxu0 0.0
        %1201 = vmatpush.msra.mxu0 0.0
        %1202 = vmatpush.msra.mxu0 0.0
        %1203 = vmatpush.msra.mxu0 0.0
        %1204 = vmatpush.msra.mxu0 0.0
        %1205 = vmatpush.msra.mxu0 0.0
        %1206 = vmatpush.msra.mxu0 0.0
        %1207 = vmatpush.msra.mxu0 0.0
        %1208 = vmatpush.msra.mxu0 0.0
        %1209 = vmatpush.msra.mxu0 0.0
        %1210 = vmatpush.msra.mxu0 0.0
        %1211 = vmatpush.msra.mxu0 0.0
        %1212 = vmatpush.msra.mxu0 0.0
        %1213 = vmatpush.msra.mxu0 0.0
        %1214 = vmatpush.msra.mxu0 %v1110
        %1215 = vmatpush.msra.mxu0 %v1109
        %1216 = vmatmul.f32.gmra.mxu0 %v1198
        %v1217 = vpop.f32.mrf.mxu0
        %v1218 = vadd.f32 %v1195, %v1217
        %1219 = vdwg.mxu0
        %s1220 = scalar_lea.vmem %s5, 1
        %v1221 = vld [vmem:[%s1220] sm:$0x1]
        %v1223 = vperm.slane %v1221, 0
        %v1225 = vadd.f32 %v1218, %v1223
        %v1226 = vadd.f32 %v1225, %v1014
        %v1227 = vsel %vm697, %v1226, 0.0
        %1228 = vadd.xlane.f32.xlu0 %v1227
        %v1229 = vpop.xlane.xlu0 %1228
        %v1230 = vmul.f32 %v1229, %v909
        %v1231 = vsub.f32 %v1226, %v1230
        %v1232 = vmul.f32 %v1231, %v1231
        %v1233 = vsel %vm697, %v1232, 0.0
        %1234 = vadd.xlane.f32.xlu0 %v1233
        %v1235 = vpop.xlane.xlu0 %1234
        %v1236 = vmul.f32 %v1235, %v909
        %v1237 = vadd.f32 %v1236, 1e-05
        %v1238 = vrsqrt.pop %v1237
        %v1239 = vmul.f32 %v1238, %v1237
        %v1240 = vmul.f32 %v1239, %v1238
        %v1241 = vmul.f32 0.5, %v1240
        %v1242 = vsub.f32 1.5, %v1241
        %v1243 = vmul.f32 %v1238, %v1242
        %vm1244 = vweird.f32 %v1237
        %vm1245 = vweird.f32 %v1238
        %vm1246 = vmor %vm1244, %vm1245
        %v1247 = vsel %vm1246, %v1238, %v1243
        %v1248 = vmul.f32 %v1231, %v1247
        %s1249 = scalar_lea.vmem [#allocation7], 32
        %v1250 = vld [vmem:[%s1249] sm:$0xff]
        %v1251 = vld [vmem:[%s1249 + $0x8] sm:$0xff]
        %v1252 = vld [vmem:[%s1249 + $0x10] sm:$0xff]
        %v1253 = vld [vmem:[%s1249 + $0x18] sm:$0xff]
        %s1254 = scalar_lea.vmem %s7, 1
        %v1255 = vld [vmem:[%s1254] sm:$0x1]
        %v1257 = vperm.slane %v1255, 0
        %v1260 = vsel %vm697, %v1248, 0
        %1262 = vmatpush.msra.mxu0 0.0
        %1263 = vmatpush.msra.mxu0 0.0
        %1264 = vmatpush.msra.mxu0 0.0
        %1265 = vmatpush.msra.mxu0 0.0
        %1266 = vmatpush.msra.mxu0 0.0
        %1267 = vmatpush.msra.mxu0 0.0
        %1268 = vmatpush.msra.mxu0 0.0
        %1269 = vmatpush.msra.mxu0 0.0
        %1270 = vmatpush.msra.mxu0 0.0
        %1271 = vmatpush.msra.mxu0 0.0
        %1272 = vmatpush.msra.mxu0 0.0
        %1273 = vmatpush.msra.mxu0 0.0
        %1274 = vmatpush.msra.mxu0 %v1253
        %1275 = vmatpush.msra.mxu0 %v1252
        %1276 = vmatpush.msra.mxu0 %v1251
        %1277 = vmatpush.msra.mxu0 %v1250
        %1278 = vmatmul.f32.gmra.mxu0 %v1260
        %v1279 = vpop.f32.mrf.mxu0
        %v1280 = vadd.f32 %v1257, %v1279
        %1281 = vdwg.mxu0
        %v1282 = vmax.f32 %v1280, 0.0
        %s1283 = scalar_lea.vmem [#allocation9], 32
        %v1284 = vld [vmem:[%s1283] sm:$0xff]
        %v1285 = vld [vmem:[%s1283 + $0x8] sm:$0xff]
        %v1286 = vld [vmem:[%s1283 + $0x10] sm:$0xff]
        %v1287 = vld [vmem:[%s1283 + $0x18] sm:$0xff]
        %s1288 = scalar_lea.vmem %s9, 1
        %v1289 = vld [vmem:[%s1288] sm:$0x1]
        %v1291 = vperm.slane %v1289, 0
        %v1294 = vsel %vm697, %v1282, 0
        %1296 = vmatpush.msra.mxu0 0.0
        %1297 = vmatpush.msra.mxu0 0.0
        %1298 = vmatpush.msra.mxu0 0.0
        %1299 = vmatpush.msra.mxu0 0.0
        %1300 = vmatpush.msra.mxu0 0.0
        %1301 = vmatpush.msra.mxu0 0.0
        %1302 = vmatpush.msra.mxu0 0.0
        %1303 = vmatpush.msra.mxu0 0.0
        %1304 = vmatpush.msra.mxu0 0.0
        %1305 = vmatpush.msra.mxu0 0.0
        %1306 = vmatpush.msra.mxu0 0.0
        %1307 = vmatpush.msra.mxu0 0.0
        %1308 = vmatpush.msra.mxu0 %v1287
        %1309 = vmatpush.msra.mxu0 %v1286
        %1310 = vmatpush.msra.mxu0 %v1285
        %1311 = vmatpush.msra.mxu0 %v1284
        %1312 = vmatmul.f32.gmra.mxu0 %v1294
        %v1313 = vpop.f32.mrf.mxu0
        %v1314 = vadd.f32 %v1291, %v1313
        %1315 = vdwg.mxu0
        %v1316 = vadd.f32 %v1314, %v1248
        %v1317 = vsel %vm697, %v1316, 0.0
        %1318 = vadd.xlane.f32.xlu0 %v1317
        %v1319 = vpop.xlane.xlu0 %1318
        %v1320 = vmul.f32 %v1319, %v909
        %v1321 = vsub.f32 %v1316, %v1320
        %v1322 = vmul.f32 %v1321, %v1321
        %v1323 = vsel %vm697, %v1322, 0.0
        %1324 = vadd.xlane.f32.xlu0 %v1323
        %v1325 = vpop.xlane.xlu0 %1324
        %v1326 = vmul.f32 %v1325, %v909
        %v1327 = vadd.f32 %v1326, 1e-05
        %v1328 = vrsqrt.pop %v1327
        %v1329 = vmul.f32 %v1328, %v1327
        %v1330 = vmul.f32 %v1329, %v1328
        %v1331 = vmul.f32 0.5, %v1330
        %v1332 = vsub.f32 1.5, %v1331
        %v1333 = vmul.f32 %v1328, %v1332
        %vm1334 = vweird.f32 %v1327
        %vm1335 = vweird.f32 %v1328
        %vm1336 = vmor %vm1334, %vm1335
        %v1337 = vsel %vm1336, %v1328, %v1333
        %v1338 = vmul.f32 %v1321, %v1337
        %v1339 = vld [vmem:[#allocation10] sm:$0xff]
        %v1340 = vld [vmem:[#allocation10 + $0x8] sm:$0xff]
        %v1341 = vld [vmem:[#allocation10 + $0x10] sm:$0xff]
        %v1342 = vld [vmem:[#allocation10 + $0x18] sm:$0xff]
        %v1343 = vld [vmem:[#allocation12] sm:$0x1]
        %v1345 = vperm.slane %v1343, 0
        %v1348 = vsel %vm697, %v1338, 0
        %1350 = vmatpush.msra.mxu0 0.0
        %1351 = vmatpush.msra.mxu0 0.0
        %1352 = vmatpush.msra.mxu0 0.0
        %1353 = vmatpush.msra.mxu0 0.0
        %1354 = vmatpush.msra.mxu0 0.0
        %1355 = vmatpush.msra.mxu0 0.0
        %1356 = vmatpush.msra.mxu0 0.0
        %1357 = vmatpush.msra.mxu0 0.0
        %1358 = vmatpush.msra.mxu0 0.0
        %1359 = vmatpush.msra.mxu0 0.0
        %1360 = vmatpush.msra.mxu0 0.0
        %1361 = vmatpush.msra.mxu0 0.0
        %1362 = vmatpush.msra.mxu0 %v1342
        %1363 = vmatpush.msra.mxu0 %v1341
        %1364 = vmatpush.msra.mxu0 %v1340
        %1365 = vmatpush.msra.mxu0 %v1339
        %1366 = vmatmul.f32.gmra.mxu0 %v1348
        %v1367 = vpop.f32.mrf.mxu0
        %v1368 = vadd.f32 %v1345, %v1367
        %1369 = vdwg.mxu0
        %v1370 = vld [vmem:[#allocation4] sm:$0xff]
        %v1372 = vsel %vm721, %v1370, 0
        %v1375 = vsel %vm721, %v1368, 0
        %1377 = vmatpush.xpose.msra.mxu0 0.0
        %1378 = vmatpush.xpose.msra.mxu0 0.0
        %1379 = vmatpush.xpose.msra.mxu0 0.0
        %1380 = vmatpush.xpose.msra.mxu0 0.0
        %1381 = vmatpush.xpose.msra.mxu0 0.0
        %1382 = vmatpush.xpose.msra.mxu0 0.0
        %1383 = vmatpush.xpose.msra.mxu0 0.0
        %1384 = vmatpush.xpose.msra.mxu0 0.0
        %1385 = vmatpush.xpose.msra.mxu0 0.0
        %1386 = vmatpush.xpose.msra.mxu0 0.0
        %1387 = vmatpush.xpose.msra.mxu0 0.0
        %1388 = vmatpush.xpose.msra.mxu0 0.0
        %1389 = vmatpush.xpose.msra.mxu0 0.0
        %1390 = vmatpush.xpose.msra.mxu0 0.0
        %1391 = vmatpush.xpose.msra.mxu0 0.0
        %1392 = vmatpush.xpose.msra.mxu0 %v1375
        %1393 = vmatmul.f32.gmra.mxu0 %v1372
        %v1394 = vpop.f32.mrf.mxu0
        %v1395 = vadd.f32 0.0, %v1394
        %1396 = vdwg.mxu0
        %v1397 = vsel %vm745, %v1395, -inf
        %1398 = vmax.xlane.f32.xlu0 %v1397
        %v1399 = vpop.xlane.xlu0 %1398
        %v1400 = vsub.f32 %v1395, %v1399
        %v1401 = vmul.f32 %v1400, 1.442695
        %v1402 = vpow.pop %v1401
        %v1403 = vsel %vm745, %v1402, 0.0
        %1404 = vadd.xlane.f32.xlu0 %v1403
        %v1405 = vpop.xlane.xlu0 %1404
        %v1406 = vrcp.pop %v1405
        %v1407 = vmul.f32 %v1402, %v1406
        %1408 = vrot.lane.b32.xlu0 %v1368, 96
        %v1409 = vpop.permute.xlu0 %1408
        %v1412 = vsel %vm745, %v1407, 0
        %1414 = vmatpush.msra.mxu0 0.0
        %1415 = vmatpush.msra.mxu0 0.0
        %1416 = vmatpush.msra.mxu0 0.0
        %1417 = vmatpush.msra.mxu0 0.0
        %1418 = vmatpush.msra.mxu0 0.0
        %1419 = vmatpush.msra.mxu0 0.0
        %1420 = vmatpush.msra.mxu0 0.0
        %1421 = vmatpush.msra.mxu0 0.0
        %1422 = vmatpush.msra.mxu0 0.0
        %1423 = vmatpush.msra.mxu0 0.0
        %1424 = vmatpush.msra.mxu0 0.0
        %1425 = vmatpush.msra.mxu0 0.0
        %1426 = vmatpush.msra.mxu0 0.0
        %1427 = vmatpush.msra.mxu0 0.0
        %1428 = vmatpush.msra.mxu0 0.0
        %1429 = vmatpush.msra.mxu0 %v1409
        %1430 = vmatmul.f32.gmra.mxu0 %v1412
        %v1431 = vpop.f32.mrf.mxu0
        %v1432 = vadd.f32 0.0, %v1431
        %1433 = vdwg.mxu0
        %v1434 = vld [vmem:[%s12] sm:$0xff]
        %v1435 = vld [vmem:[%s12 + $0x8] sm:$0xff]
        %1436 = vrot.lane.b32.xlu0 %v1370, 112
        %v1437 = vpop.permute.xlu0 %1436
        %1438 = vrot.lane.b32.xlu0 %v1368, 112
        %v1439 = vpop.permute.xlu0 %1438
        %v1440 = vsel %vm721, %v1437, 0
        %v1442 = vsel %vm721, %v1439, 0
        %1444 = vmatpush.xpose.msra.mxu0 0.0
        %1445 = vmatpush.xpose.msra.mxu0 0.0
        %1446 = vmatpush.xpose.msra.mxu0 0.0
        %1447 = vmatpush.xpose.msra.mxu0 0.0
        %1448 = vmatpush.xpose.msra.mxu0 0.0
        %1449 = vmatpush.xpose.msra.mxu0 0.0
        %1450 = vmatpush.xpose.msra.mxu0 0.0
        %1451 = vmatpush.xpose.msra.mxu0 0.0
        %1452 = vmatpush.xpose.msra.mxu0 0.0
        %1453 = vmatpush.xpose.msra.mxu0 0.0
        %1454 = vmatpush.xpose.msra.mxu0 0.0
        %1455 = vmatpush.xpose.msra.mxu0 0.0
        %1456 = vmatpush.xpose.msra.mxu0 0.0
        %1457 = vmatpush.xpose.msra.mxu0 0.0
        %1458 = vmatpush.xpose.msra.mxu0 0.0
        %1459 = vmatpush.xpose.msra.mxu0 %v1442
        %1460 = vmatmul.f32.gmra.mxu0 %v1440
        %v1461 = vpop.f32.mrf.mxu0
        %v1462 = vadd.f32 0.0, %v1461
        %1463 = vdwg.mxu0
        %v1464 = vsel %vm745, %v1462, -inf
        %1465 = vmax.xlane.f32.xlu0 %v1464
        %v1466 = vpop.xlane.xlu0 %1465
        %v1467 = vsub.f32 %v1462, %v1466
        %v1468 = vmul.f32 %v1467, 1.442695
        %v1469 = vpow.pop %v1468
        %v1470 = vsel %vm745, %v1469, 0.0
        %1471 = vadd.xlane.f32.xlu0 %v1470
        %v1472 = vpop.xlane.xlu0 %1471
        %v1473 = vrcp.pop %v1472
        %v1474 = vmul.f32 %v1469, %v1473
        %1475 = vrot.lane.b32.xlu0 %v1368, 80
        %v1476 = vpop.permute.xlu0 %1475
        %v1479 = vsel %vm745, %v1474, 0
        %1481 = vmatpush.msra.mxu0 0.0
        %1482 = vmatpush.msra.mxu0 0.0
        %1483 = vmatpush.msra.mxu0 0.0
        %1484 = vmatpush.msra.mxu0 0.0
        %1485 = vmatpush.msra.mxu0 0.0
        %1486 = vmatpush.msra.mxu0 0.0
        %1487 = vmatpush.msra.mxu0 0.0
        %1488 = vmatpush.msra.mxu0 0.0
        %1489 = vmatpush.msra.mxu0 0.0
        %1490 = vmatpush.msra.mxu0 0.0
        %1491 = vmatpush.msra.mxu0 0.0
        %1492 = vmatpush.msra.mxu0 0.0
        %1493 = vmatpush.msra.mxu0 0.0
        %1494 = vmatpush.msra.mxu0 0.0
        %1495 = vmatpush.msra.mxu0 0.0
        %1496 = vmatpush.msra.mxu0 %v1476
        %1497 = vmatmul.f32.gmra.mxu0 %v1479
        %v1498 = vpop.f32.mrf.mxu0
        %v1499 = vadd.f32 0.0, %v1498
        %1500 = vdwg.mxu0
        %v1501 = vld [vmem:[%s12 + $0x10] sm:$0xff]
        %v1502 = vld [vmem:[%s12 + $0x18] sm:$0xff]
        %v1504 = vsel %vm721, %v1499, 0
        %1506 = vmatpush.msra.mxu0 0.0
        %1507 = vmatpush.msra.mxu0 0.0
        %1508 = vmatpush.msra.mxu0 0.0
        %1509 = vmatpush.msra.mxu0 0.0
        %1510 = vmatpush.msra.mxu0 0.0
        %1511 = vmatpush.msra.mxu0 0.0
        %1512 = vmatpush.msra.mxu0 0.0
        %1513 = vmatpush.msra.mxu0 0.0
        %1514 = vmatpush.msra.mxu0 0.0
        %1515 = vmatpush.msra.mxu0 0.0
        %1516 = vmatpush.msra.mxu0 0.0
        %1517 = vmatpush.msra.mxu0 0.0
        %1518 = vmatpush.msra.mxu0 0.0
        %1519 = vmatpush.msra.mxu0 0.0
        %1520 = vmatpush.msra.mxu0 %v1502
        %1521 = vmatpush.msra.mxu0 %v1501
        %1522 = vmatmul.f32.gmra.mxu0 %v1504
        %v1523 = vpop.f32.mrf.mxu0
        %v1524 = vadd.f32 0.0, %v1523
        %1525 = vdwg.mxu0
        %v1527 = vsel %vm721, %v1432, 0
        %1529 = vmatpush.msra.mxu0 0.0
        %1530 = vmatpush.msra.mxu0 0.0
        %1531 = vmatpush.msra.mxu0 0.0
        %1532 = vmatpush.msra.mxu0 0.0
        %1533 = vmatpush.msra.mxu0 0.0
        %1534 = vmatpush.msra.mxu0 0.0
        %1535 = vmatpush.msra.mxu0 0.0
        %1536 = vmatpush.msra.mxu0 0.0
        %1537 = vmatpush.msra.mxu0 0.0
        %1538 = vmatpush.msra.mxu0 0.0
        %1539 = vmatpush.msra.mxu0 0.0
        %1540 = vmatpush.msra.mxu0 0.0
        %1541 = vmatpush.msra.mxu0 0.0
        %1542 = vmatpush.msra.mxu0 0.0
        %1543 = vmatpush.msra.mxu0 %v1435
        %1544 = vmatpush.msra.mxu0 %v1434
        %1545 = vmatmul.f32.gmra.mxu0 %v1527
        %v1546 = vpop.f32.mrf.mxu0
        %v1547 = vadd.f32 %v1524, %v1546
        %1548 = vdwg.mxu0
        %v1549 = vld [vmem:[%s13] sm:$0x1]
        %v1551 = vperm.slane %v1549, 0
        %v1553 = vadd.f32 %v1547, %v1551
        %v1554 = vld [vmem:[%s14] sm:$0x3]
        %v1555 = vld [vmem:[%s15] sm:$0x1]
        %v1557 = vperm.slane %v1555, 0
        %vm1559 = vcmask 15360
        %v1561 = vsel %vm1559, %v1553, 0
        %vm1563 = vcmask 1041408
        %v1565 = vsel %vm1563, %v1554, 0
        %1567 = vmatpush.msra.mxu0 0.0
        %1568 = vmatpush.msra.mxu0 0.0
        %1569 = vmatpush.msra.mxu0 0.0
        %1570 = vmatpush.msra.mxu0 0.0
        %1571 = vmatpush.msra.mxu0 0.0
        %1572 = vmatpush.msra.mxu0 0.0
        %1573 = vmatpush.msra.mxu0 0.0
        %1574 = vmatpush.msra.mxu0 0.0
        %1575 = vmatpush.msra.mxu0 0.0
        %1576 = vmatpush.msra.mxu0 0.0
        %1577 = vmatpush.msra.mxu0 0.0
        %1578 = vmatpush.msra.mxu0 0.0
        %1579 = vmatpush.msra.mxu0 0.0
        %1580 = vmatpush.msra.mxu0 0.0
        %1581 = vmatpush.msra.mxu0 0.0
        %1582 = vmatpush.msra.mxu0 %v1565
        %1583 = vmatmul.f32.gmra.mxu0 %v1561
        %v1584 = vpop.f32.mrf.mxu0
        %v1585 = vadd.f32 %v1557, %v1584
        %1586 = vdwg.mxu0
        %v1587 = vmax.f32 %v1585, 0.0
        %v1588 = vld [vmem:[%s16] sm:$0xff]
        %v1589 = vld [vmem:[%s16 + $0x8] sm:$0xff]
        %v1590 = vld [vmem:[%s16 + $0x10] sm:$0xff]
        %v1591 = vld [vmem:[%s16 + $0x18] sm:$0xff]
        %v1592 = vld [vmem:[%s17] sm:$0x1]
        %v1594 = vperm.slane %v1592, 0
        %v1597 = vsel %vm697, %v1587, 0
        %1599 = vmatpush.msra.mxu0 0.0
        %1600 = vmatpush.msra.mxu0 0.0
        %1601 = vmatpush.msra.mxu0 0.0
        %1602 = vmatpush.msra.mxu0 0.0
        %1603 = vmatpush.msra.mxu0 0.0
        %1604 = vmatpush.msra.mxu0 0.0
        %1605 = vmatpush.msra.mxu0 0.0
        %1606 = vmatpush.msra.mxu0 0.0
        %1607 = vmatpush.msra.mxu0 0.0
        %1608 = vmatpush.msra.mxu0 0.0
        %1609 = vmatpush.msra.mxu0 0.0
        %1610 = vmatpush.msra.mxu0 0.0
        %1611 = vmatpush.msra.mxu0 %v1591
        %1612 = vmatpush.msra.mxu0 %v1590
        %1613 = vmatpush.msra.mxu0 %v1589
        %1614 = vmatpush.msra.mxu0 %v1588
        %1615 = vmatmul.f32.gmra.mxu0 %v1597
        %v1616 = vpop.f32.mrf.mxu0
        %v1617 = vadd.f32 %v1594, %v1616
        %1618 = vdwg.mxu0
        %1619 = vst.msk [vmem:[%s687] sm:$0xff] %vm1559, %v1617
        %p1620 = scmp.lt.s32.totalorder %s35, 1
        %s1621 = scalar_select %p1620, %s35, 1
        %s1622 = smul.addr %s1621, 8
        %s1623 = scalar_lea.vmem %s18, %s1622
        // Predicated region
        $region121: #{tpu_custom_call.1} parent=91 // pred_check
          %p1624 = pneg %p436
        $region122: #{tpu_custom_call.1} parent=91 // pred_check_branch
          %1626 = sbr.rel (%p1624) target = $region124
        $region123: #{tpu_custom_call.1} parent=91 // pred_region
          _
        $region124: #{tpu_custom_call.1} parent=91 // pred_fallthru
          _
      $region92: #{tpu_custom_call.1} parent=5 // pred_fallthru
        _
      %p1627 = scmp.le.s32.totalorder 2, %s30
      // Predicated region
      $region125: #{tpu_custom_call.1} parent=5 // pred_check
        %p1628 = pneg %p1627
      $region126: #{tpu_custom_call.1} parent=5 // pred_check_branch
        %1630 = sbr.rel (%p1628) target = $region128
      $region127: #{tpu_custom_call.1} parent=5 // pred_region
        %s1631 = ssub.s32 %s30, 2
        // Predicated region
        $region129: #{tpu_custom_call.1} parent=127 // pred_check
          %p1632 = pneg %p442
        $region130: #{tpu_custom_call.1} parent=127 // pred_check_branch
          %1634 = sbr.rel (%p1632) target = $region132
        $region131: #{tpu_custom_call.1} parent=127 // pred_region
          %p1635 = scmp.lt.s32.totalorder %s36, 1
          %s1636 = scalar_select %p1635, %s36, 1
          %s1637 = smul.addr %s1636, 8
          %s1638 = scalar_lea.vmem %s18, %s1637
        $region132: #{tpu_custom_call.1} parent=127 // pred_fallthru
          _
      $region128: #{tpu_custom_call.1} parent=5 // pred_fallthru
        _
    $region6: #{tpu_custom_call.1} parent=1 // loop_footer
      %s34 = sadd.s32 1, %s30
    $region7: #{tpu_custom_call.1} parent=1 // loop_footer_branch
      %29 = sbr.rel target = $region3
    $region8: #{tpu_custom_call.1} parent=1 // loop_exit
      _
    %1639 = vsyncpa [#allocation3], 1
    %s1640 = scalar_lea.sflag [#allocation3], 1
    %1641 = vsyncpa %s1640, 1
    %1642 = vsyncpa [#allocation5], 1
    %1643 = vsyncpa [#allocation8], 1
    %1644 = vsyncpa [#allocation11], 1

</llo_original>
